<compile_context>
chip_gen: v5e
topology: v5e:2x2
jax: 0.10.0
libtpu: 0.0.40
codegen_flags: <defaults>
</compile_context>

<pallas_src>
import jax
import jax.numpy as jnp
from jax.experimental import pallas as pl
from jax.experimental.pallas import tpu as pltpu


def _cdiv(a, b):
    return -(-a // b)


def _pick_tile_s(cin, k, s):
    """Largest lane-dense spatial tile that keeps the double-buffered working
    set (f32 activation tile + two f32 output tiles) under ~12 MiB."""
    budget = 12 * 1024 * 1024
    per_lane = 2 * (4 * cin + 8 * k)          # x2 for double buffering
    t = budget // per_lane
    t = max(128, min(2048, (t // 128) * 128))
    # If the whole feature map fits in one tile, use the full (possibly <128
    # or non-multiple-of-128) spatial extent: full-dim blocks are always legal.
    return s if s <= t else t


# ----------------------------------------------------------------------------
# Fused kernel: 1x1 conv (matmul) + bias + sigmoid + box decode.
# Layout: channels (K = na*no) in sublanes, spatial positions in lanes.
# ----------------------------------------------------------------------------
def _detect_layer_kernel(x_ref, w_ref, coef_ref, g_ref, raw_ref, dec_ref):
    # x_ref:    (Cin, tS) f32 activation tile (spatial positions in lanes)
    # w_ref:    (K, Cin)  bf16 1x1-conv weights        (constant block)
    # coef_ref: (K, 8)    f32 [bias, alpha, beta, sgx, sgy, 0, 0, 0]
    # g_ref:    (2, tS)   f32 [gx - 0.5 ; gy - 0.5] for this spatial tile
    # raw_ref:  (K, tS)   f32 conv output (the module's returned `x`)
    # dec_ref:  (K, tS)   f32 decoded output (rows of `z`)
    x = x_ref[...].astype(jnp.bfloat16)       # in-kernel cast, no HBM prologue
    raw = jnp.dot(w_ref[...], x, preferred_element_type=jnp.float32)

    coef = coef_ref[...]
    bias = coef[:, 0:1]
    alpha = coef[:, 1:2]
    beta = coef[:, 2:3]
    sgx = coef[:, 3:4]
    sgy = coef[:, 4:5]

    raw = raw + bias
    raw_ref[...] = raw

    s = jax.nn.sigmoid(raw)
    # gamma = stride*(grid-0.5) on the xy channels, 0 elsewhere.
    gamma = sgx * g_ref[0:1, :] + sgy * g_ref[1:2, :]
    # y = alpha*s^2 + beta*s + gamma  (alpha: wh channels; beta: xy/obj/cls)
    dec_ref[...] = (alpha * s + beta) * s + gamma


def _run_detect_layer(x, w, coef, g, *, tile_s):
    bs, cin, s = x.shape
    k = w.shape[0]
    n_tiles = _cdiv(s, tile_s)                # ragged last tile is clipped

    out_spec = pl.BlockSpec((None, k, tile_s), lambda t, b: (b, 0, t))
    return pl.pallas_call(
        _detect_layer_kernel,
        out_shape=(jax.ShapeDtypeStruct((bs, k, s), jnp.float32),
                   jax.ShapeDtypeStruct((bs, k, s), jnp.float32)),
        grid_spec=pltpu.PrefetchScalarGridSpec(
            num_scalar_prefetch=0,
            grid=(n_tiles, bs),               # tile outer, batch inner
            in_specs=[
                pl.BlockSpec((None, cin, tile_s), lambda t, b: (b, 0, t)),
                pl.BlockSpec((k, cin), lambda t, b: (0, 0)),   # weights (const)
                pl.BlockSpec((k, 8), lambda t, b: (0, 0)),     # coeffs (const)
                pl.BlockSpec((2, tile_s), lambda t, b: (0, t)),
            ],
            out_specs=[out_spec, out_spec],
        ),
        compiler_params=pltpu.CompilerParams(
            dimension_semantics=("parallel", "parallel"),
            vmem_limit_bytes=32 * 1024 * 1024),
    )(x, w, coef, g)


# ----------------------------------------------------------------------------
# Detect module (inference forward) built on the per-layer fused kernel
# ----------------------------------------------------------------------------
class DetectPallas:
    def __init__(self, nc, anchors, ch, strides, key):
        self.nc = nc
        self.no = nc + 5
        self.nl = len(anchors)
        self.na = len(anchors[0]) // 2
        self.k = self.na * self.no
        self.anchors = jnp.asarray(anchors, jnp.float32).reshape(self.nl, -1, 2)
        # stride is normally set by the parent YOLO model; fixed here.
        self.stride = jnp.asarray(strides, jnp.float32)

        # nn.Conv2d(c, no*na, 1) parameters (f32 master copy for the reference).
        self.w_list, self.b_list = [], []
        kk = key
        for c in ch:
            kk, kw, kb = jax.random.split(kk, 3)
            self.w_list.append(0.05 * jax.random.normal(kw, (self.k, c), jnp.float32))
            self.b_list.append(0.05 * jax.random.normal(kb, (self.k,), jnp.float32))
        self.w_bf16 = [w.astype(jnp.bfloat16) for w in self.w_list]

        # Packed per-(layer, channel) decode coefficients (K, 8):
        #   y = alpha*s^2 + beta*s + gamma,  gamma = sgx*(gx-0.5) + sgy*(gy-0.5)
        #   xy (o in {0,1}): (2s - 0.5 + g)*stride -> beta=2*stride, sg{x,y}=stride
        #   wh (o in {2,3}): (2s)^2 * anchor       -> alpha=4*anchor
        #   obj/cls        : s                     -> beta=1
        r = jnp.arange(self.k)
        o = r % self.no
        a = r // self.no
        self.coefs = []
        for i in range(self.nl):
            aw = self.anchors[i, a, 0]
            ah = self.anchors[i, a, 1]
            st = self.stride[i]
            alpha = jnp.where(o == 2, 4.0 * aw, jnp.where(o == 3, 4.0 * ah, 0.0))
            beta = jnp.where(o < 2, 2.0 * st, jnp.where(o < 4, 0.0, 1.0))
            sgx = jnp.where(o == 0, st, 0.0)
            sgy = jnp.where(o == 1, st, 0.0)
            coef = jnp.zeros((self.k, 8), jnp.float32)
            coef = coef.at[:, 0].set(self.b_list[i])
            coef = coef.at[:, 1].set(alpha)
            coef = coef.at[:, 2].set(beta)
            coef = coef.at[:, 3].set(sgx)
            coef = coef.at[:, 4].set(sgy)
            self.coefs.append(coef)

    def __call__(self, xs):
        assert len(xs) == self.nl
        bs = xs[0].shape[0]
        z, x_out = [], []
        for i, x in enumerate(xs):
            _, c, ny, nx = x.shape
            s = ny * nx
            tile_s = _pick_tile_s(c, self.k, s)

            # (gx-0.5, gy-0.5) per spatial position: trace-time constant,
            # ~8 B/pixel of HBM read vs 4*Cin B/pixel of activations.
            gyv, gxv = jnp.meshgrid(jnp.arange(ny, dtype=jnp.float32),
                                    jnp.arange(nx, dtype=jnp.float32),
                                    indexing="ij")
            g = jnp.stack([gxv.reshape(-1) - 0.5, gyv.reshape(-1) - 0.5], axis=0)

            xf = x.reshape(bs, c, s)          # NCHW -> (bs, C, ny*nx): free view
            raw_l, dec_l = _run_detect_layer(xf, self.w_bf16[i], self.coefs[i],
                                             g, tile_s=tile_s)

            # Reshape back to the PyTorch output layouts (small XLA epilogue;
            # required because the module's contract returns these layouts).
            raw5 = raw_l.reshape(bs, self.na, self.no, ny, nx).transpose(0, 1, 3, 4, 2)
            z_l = dec_l.reshape(bs, self.na, self.no, s).transpose(0, 1, 3, 2)
            z.append(z_l.reshape(bs, self.na * s, self.no))
            x_out.append(raw5)
        return jnp.concatenate(z, axis=1), x_out


# ----------------------------------------------------------------------------
# Pure-JAX reference (mirrors the PyTorch forward; same bf16 conv precision)
# ----------------------------------------------------------------------------
def _reference(det, xs):
    z, x_out = [], []
    for i, x in enumerate(xs):
        bs, cin, ny, nx = x.shape
        no, na = det.no, det.na
        xb = jnp.transpose(x, (0, 2, 3, 1)).reshape(-1, cin).astype(jnp.bfloat16)
        wb = det.w_list[i].astype(jnp.bfloat16)               # (K, Cin)
        raw = jnp.dot(xb, wb.T, preferred_element_type=jnp.float32) + det.b_list[i]
        raw5 = raw.reshape(bs, ny, nx, na, no).transpose(0, 3, 1, 2, 4)
        y = jax.nn.sigmoid(raw5)
        gyv, gxv = jnp.meshgrid(jnp.arange(ny, dtype=jnp.float32),
                                jnp.arange(nx, dtype=jnp.float32), indexing="ij")
        grid = jnp.stack((gxv, gyv), axis=-1).reshape(1, 1, ny, nx, 2)
        anchor_grid = det.anchors[i].reshape(1, na, 1, 1, 2)
        xy = (y[..., 0:2] * 2.0 - 0.5 + grid) * det.stride[i]
        wh = (y[..., 2:4] * 2.0) ** 2 * anchor_grid
        y = jnp.concatenate([xy, wh, y[..., 4:]], axis=-1)
        z.append(y.reshape(bs, -1, no))
        x_out.append(raw5)
    return jnp.concatenate(z, axis=1), x_out


if __name__ == "__main__":
    key = jax.random.PRNGKey(0)
    nc = 3                                   # small class count -> no = 8, K = 24
    anchors = [[10, 13, 16, 30, 33, 23],
               [30, 61, 62, 45, 59, 119],
               [116, 90, 156, 198, 373, 326]]
    ch = (8, 16, 32)
    strides = (8.0, 16.0, 32.0)
    det = DetectPallas(nc, anchors, ch, strides, key)

    bs = 2
    spatial = (16, 8, 4)
    kx = jax.random.split(jax.random.PRNGKey(1), len(ch))
    xs = [jax.random.normal(kx[i], (bs, ch[i], spatial[i], spatial[i]), jnp.float32)
          for i in range(len(ch))]

    fwd = jax.jit(lambda *inputs: det(list(inputs)))
    z, x_out = fwd(*xs)
    jax.block_until_ready(z)
    for t in x_out:
        jax.block_until_ready(t)

    # Verify against a pure-JAX mirror of the torch semantics.
    z_ref, x_ref = _reference(det, xs)
    assert z.shape == z_ref.shape, (z.shape, z_ref.shape)
    assert jnp.allclose(z, z_ref, rtol=1e-3, atol=5e-3), "z mismatch"
    for got, ref in zip(x_out, x_ref):
        assert got.shape == ref.shape
        assert jnp.allclose(got, ref, rtol=1e-3, atol=5e-3), "x mismatch"

    print("KERNEL_OK")
</pallas_src>

<mosaic_0001>
module attributes {stable_mosaic.version = 11 : i64} {
  func.func @_detect_layer_kernel(%arg0: i32, %arg1: i32, %arg2: memref<1x8x256xf32, #tpu.memory_space<vmem>>, %arg3: memref<24x8xbf16, #tpu.memory_space<vmem>>, %arg4: memref<24x8xf32, #tpu.memory_space<vmem>>, %arg5: memref<2x256xf32, #tpu.memory_space<vmem>>, %arg6: memref<1x24x256xf32, #tpu.memory_space<vmem>>, %arg7: memref<1x24x256xf32, #tpu.memory_space<vmem>>) attributes {dimension_semantics = [#tpu.dimension_semantics<parallel>, #tpu.dimension_semantics<parallel>], iteration_bounds = array<i64: 1, 2>, scalar_prefetch = 0 : i64, scratch_operands = 0 : i64, tpu.core_type = #tpu.core_type<tc>, window_params = [{transform_indices = @transform_0, window_bounds = array<i64: 1, 8, 256>}, {pipeline_mode = #tpu.pipeline_mode<synchronous>, transform_indices = @transform_1, window_bounds = array<i64: 24, 8>}, {pipeline_mode = #tpu.pipeline_mode<synchronous>, transform_indices = @transform_2, window_bounds = array<i64: 24, 8>}, {transform_indices = @transform_3, window_bounds = array<i64: 2, 256>}, {transform_indices = @transform_4, window_bounds = array<i64: 1, 24, 256>}, {transform_indices = @transform_5, window_bounds = array<i64: 1, 24, 256>}]} {
    %c0 = arith.constant 0 : index
    %c0_0 = arith.constant 0 : index
    %c0_1 = arith.constant 0 : index
    %0 = vector.load %arg2[%c0, %c0_0, %c0_1] : memref<1x8x256xf32, #tpu.memory_space<vmem>>, vector<1x8x256xf32>
    %1 = vector.shape_cast %0 : vector<1x8x256xf32> to vector<8x256xf32>
    %2 = arith.truncf %1 : vector<8x256xf32> to vector<8x256xbf16>
    %c0_2 = arith.constant 0 : index
    %c0_3 = arith.constant 0 : index
    %3 = vector.load %arg3[%c0_2, %c0_3] : memref<24x8xbf16, #tpu.memory_space<vmem>>, vector<24x8xbf16>
    %cst = arith.constant dense<0.000000e+00> : vector<24x256xf32>
    %4 = tpu.matmul %3, %2, %cst {dimension_numbers = #tpu.dot_dimension_numbers<[1], [0], [0], [1], [0, 0, 1, 1], [], []>} : vector<24x8xbf16>, vector<8x256xbf16>, vector<24x256xf32> -> vector<24x256xf32>
    %c0_4 = arith.constant 0 : index
    %c0_5 = arith.constant 0 : index
    %5 = vector.load %arg4[%c0_4, %c0_5] : memref<24x8xf32, #tpu.memory_space<vmem>>, vector<24x8xf32>
    %6 = vector.extract_strided_slice %5 {offsets = [0, 0], sizes = [24, 1], strides = [1, 1]} : vector<24x8xf32> to vector<24x1xf32>
    %7 = vector.extract_strided_slice %5 {offsets = [0, 1], sizes = [24, 1], strides = [1, 1]} : vector<24x8xf32> to vector<24x1xf32>
    %8 = vector.extract_strided_slice %5 {offsets = [0, 2], sizes = [24, 1], strides = [1, 1]} : vector<24x8xf32> to vector<24x1xf32>
    %9 = vector.extract_strided_slice %5 {offsets = [0, 3], sizes = [24, 1], strides = [1, 1]} : vector<24x8xf32> to vector<24x1xf32>
    %10 = vector.extract_strided_slice %5 {offsets = [0, 4], sizes = [24, 1], strides = [1, 1]} : vector<24x8xf32> to vector<24x1xf32>
    %11 = vector.broadcast %6 : vector<24x1xf32> to vector<24x256xf32>
    %12 = arith.addf %4, %11 : vector<24x256xf32>
    %c0_6 = arith.constant 0 : index
    %c0_7 = arith.constant 0 : index
    %c0_8 = arith.constant 0 : index
    %13 = vector.load %arg6[%c0_6, %c0_7, %c0_8] : memref<1x24x256xf32, #tpu.memory_space<vmem>>, vector<1x24x256xf32>
    %14 = vector.shape_cast %13 : vector<1x24x256xf32> to vector<24x256xf32>
    %15 = vector.shape_cast %12 : vector<24x256xf32> to vector<1x24x256xf32>
    tpu.vector_store %arg6[%c0_6, %c0_7, %c0_8], %15 {strides = array<i32>} : memref<1x24x256xf32, #tpu.memory_space<vmem>>, vector<1x24x256xf32>,
    %16 = arith.negf %12 : vector<24x256xf32>
    %17 = math.exp %16 : vector<24x256xf32>
    %cst_9 = arith.constant 1.000000e+00 : f32
    %18 = vector.broadcast %cst_9 : f32 to vector<24x256xf32>
    %19 = arith.addf %18, %17 : vector<24x256xf32>
    %20 = arith.divf %18, %19 : vector<24x256xf32>
    %c0_10 = arith.constant 0 : index
    %c0_11 = arith.constant 0 : index
    %21 = vector.load %arg5[%c0_10, %c0_11] : memref<2x256xf32, #tpu.memory_space<vmem>>, vector<1x256xf32>
    %22 = vector.broadcast %9 : vector<24x1xf32> to vector<24x256xf32>
    %23 = vector.broadcast %21 : vector<1x256xf32> to vector<24x256xf32>
    %24 = arith.mulf %22, %23 : vector<24x256xf32>
    %c1 = arith.constant 1 : index
    %c0_12 = arith.constant 0 : index
    %25 = vector.load %arg5[%c1, %c0_12] : memref<2x256xf32, #tpu.memory_space<vmem>>, vector<1x256xf32>
    %26 = vector.broadcast %10 : vector<24x1xf32> to vector<24x256xf32>
    %27 = vector.broadcast %25 : vector<1x256xf32> to vector<24x256xf32>
    %28 = arith.mulf %26, %27 : vector<24x256xf32>
    %29 = arith.addf %24, %28 : vector<24x256xf32>
    %30 = vector.broadcast %7 : vector<24x1xf32> to vector<24x256xf32>
    %31 = arith.mulf %30, %20 : vector<24x256xf32>
    %32 = vector.broadcast %8 : vector<24x1xf32> to vector<24x256xf32>
    %33 = arith.addf %31, %32 : vector<24x256xf32>
    %34 = arith.mulf %33, %20 : vector<24x256xf32>
    %35 = arith.addf %34, %29 : vector<24x256xf32>
    %c0_13 = arith.constant 0 : index
    %c0_14 = arith.constant 0 : index
    %c0_15 = arith.constant 0 : index
    %36 = vector.load %arg7[%c0_13, %c0_14, %c0_15] : memref<1x24x256xf32, #tpu.memory_space<vmem>>, vector<1x24x256xf32>
    %37 = vector.shape_cast %36 : vector<1x24x256xf32> to vector<24x256xf32>
    %38 = vector.shape_cast %35 : vector<24x256xf32> to vector<1x24x256xf32>
    tpu.vector_store %arg7[%c0_13, %c0_14, %c0_15], %38 {strides = array<i32>} : memref<1x24x256xf32, #tpu.memory_space<vmem>>, vector<1x24x256xf32>,
    return
  }
  func.func @transform_0(%arg0: i32, %arg1: i32) -> (i32, i32, i32) {
    %c0_i32 = arith.constant 0 : i32
    %c0_i32_0 = arith.constant 0 : i32
    return %arg1, %c0_i32, %arg0 : i32, i32, i32
  }
  func.func @transform_1(%arg0: i32, %arg1: i32) -> (i32, i32) {
    %c0_i32 = arith.constant 0 : i32
    %c0_i32_0 = arith.constant 0 : i32
    %c0_i32_1 = arith.constant 0 : i32
    return %c0_i32, %c0_i32_0 : i32, i32
  }
  func.func @transform_2(%arg0: i32, %arg1: i32) -> (i32, i32) {
    %c0_i32 = arith.constant 0 : i32
    %c0_i32_0 = arith.constant 0 : i32
    %c0_i32_1 = arith.constant 0 : i32
    return %c0_i32, %c0_i32_0 : i32, i32
  }
  func.func @transform_3(%arg0: i32, %arg1: i32) -> (i32, i32) {
    %c0_i32 = arith.constant 0 : i32
    %c0_i32_0 = arith.constant 0 : i32
    return %c0_i32, %arg0 : i32, i32
  }
  func.func @transform_4(%arg0: i32, %arg1: i32) -> (i32, i32, i32) {
    %c0_i32 = arith.constant 0 : i32
    %c0_i32_0 = arith.constant 0 : i32
    return %arg1, %c0_i32, %arg0 : i32, i32, i32
  }
  func.func @transform_5(%arg0: i32, %arg1: i32) -> (i32, i32, i32) {
    %c0_i32 = arith.constant 0 : i32
    %c0_i32_0 = arith.constant 0 : i32
    return %arg1, %c0_i32, %arg0 : i32, i32, i32
  }
}

module attributes {stable_mosaic.version = 11 : i64} {
  func.func @_detect_layer_kernel(%arg0: i32, %arg1: i32, %arg2: memref<1x32x16xf32, #tpu.memory_space<vmem>>, %arg3: memref<24x32xbf16, #tpu.memory_space<vmem>>, %arg4: memref<24x8xf32, #tpu.memory_space<vmem>>, %arg5: memref<2x16xf32, #tpu.memory_space<vmem>>, %arg6: memref<1x24x16xf32, #tpu.memory_space<vmem>>, %arg7: memref<1x24x16xf32, #tpu.memory_space<vmem>>) attributes {dimension_semantics = [#tpu.dimension_semantics<parallel>, #tpu.dimension_semantics<parallel>], iteration_bounds = array<i64: 1, 2>, scalar_prefetch = 0 : i64, scratch_operands = 0 : i64, tpu.core_type = #tpu.core_type<tc>, window_params = [{transform_indices = @transform_0, window_bounds = array<i64: 1, 32, 16>}, {pipeline_mode = #tpu.pipeline_mode<synchronous>, transform_indices = @transform_1, window_bounds = array<i64: 24, 32>}, {pipeline_mode = #tpu.pipeline_mode<synchronous>, transform_indices = @transform_2, window_bounds = array<i64: 24, 8>}, {transform_indices = @transform_3, window_bounds = array<i64: 2, 16>}, {transform_indices = @transform_4, window_bounds = array<i64: 1, 24, 16>}, {transform_indices = @transform_5, window_bounds = array<i64: 1, 24, 16>}]} {
    %c0 = arith.constant 0 : index
    %c0_0 = arith.constant 0 : index
    %c0_1 = arith.constant 0 : index
    %0 = vector.load %arg2[%c0, %c0_0, %c0_1] : memref<1x32x16xf32, #tpu.memory_space<vmem>>, vector<1x32x16xf32>
    %1 = vector.shape_cast %0 : vector<1x32x16xf32> to vector<32x16xf32>
    %2 = arith.truncf %1 : vector<32x16xf32> to vector<32x16xbf16>
    %c0_2 = arith.constant 0 : index
    %c0_3 = arith.constant 0 : index
    %3 = vector.load %arg3[%c0_2, %c0_3] : memref<24x32xbf16, #tpu.memory_space<vmem>>, vector<24x32xbf16>
    %cst = arith.constant dense<0.000000e+00> : vector<24x16xf32>
    %4 = tpu.matmul %3, %2, %cst {dimension_numbers = #tpu.dot_dimension_numbers<[1], [0], [0], [1], [0, 0, 1, 1], [], []>} : vector<24x32xbf16>, vector<32x16xbf16>, vector<24x16xf32> -> vector<24x16xf32>
    %c0_4 = arith.constant 0 : index
    %c0_5 = arith.constant 0 : index
    %5 = vector.load %arg4[%c0_4, %c0_5] : memref<24x8xf32, #tpu.memory_space<vmem>>, vector<24x8xf32>
    %6 = vector.extract_strided_slice %5 {offsets = [0, 0], sizes = [24, 1], strides = [1, 1]} : vector<24x8xf32> to vector<24x1xf32>
    %7 = vector.extract_strided_slice %5 {offsets = [0, 1], sizes = [24, 1], strides = [1, 1]} : vector<24x8xf32> to vector<24x1xf32>
    %8 = vector.extract_strided_slice %5 {offsets = [0, 2], sizes = [24, 1], strides = [1, 1]} : vector<24x8xf32> to vector<24x1xf32>
    %9 = vector.extract_strided_slice %5 {offsets = [0, 3], sizes = [24, 1], strides = [1, 1]} : vector<24x8xf32> to vector<24x1xf32>
    %10 = vector.extract_strided_slice %5 {offsets = [0, 4], sizes = [24, 1], strides = [1, 1]} : vector<24x8xf32> to vector<24x1xf32>
    %11 = vector.broadcast %6 : vector<24x1xf32> to vector<24x16xf32>
    %12 = arith.addf %4, %11 : vector<24x16xf32>
    %c0_6 = arith.constant 0 : index
    %c0_7 = arith.constant 0 : index
    %c0_8 = arith.constant 0 : index
    %13 = vector.load %arg6[%c0_6, %c0_7, %c0_8] : memref<1x24x16xf32, #tpu.memory_space<vmem>>, vector<1x24x16xf32>
    %14 = vector.shape_cast %13 : vector<1x24x16xf32> to vector<24x16xf32>
    %15 = vector.shape_cast %12 : vector<24x16xf32> to vector<1x24x16xf32>
    tpu.vector_store %arg6[%c0_6, %c0_7, %c0_8], %15 {strides = array<i32>} : memref<1x24x16xf32, #tpu.memory_space<vmem>>, vector<1x24x16xf32>,
    %16 = arith.negf %12 : vector<24x16xf32>
    %17 = math.exp %16 : vector<24x16xf32>
    %cst_9 = arith.constant 1.000000e+00 : f32
    %18 = vector.broadcast %cst_9 : f32 to vector<24x16xf32>
    %19 = arith.addf %18, %17 : vector<24x16xf32>
    %20 = arith.divf %18, %19 : vector<24x16xf32>
    %c0_10 = arith.constant 0 : index
    %c0_11 = arith.constant 0 : index
    %21 = vector.load %arg5[%c0_10, %c0_11] : memref<2x16xf32, #tpu.memory_space<vmem>>, vector<1x16xf32>
    %22 = vector.broadcast %9 : vector<24x1xf32> to vector<24x16xf32>
    %23 = vector.broadcast %21 : vector<1x16xf32> to vector<24x16xf32>
    %24 = arith.mulf %22, %23 : vector<24x16xf32>
    %c1 = arith.constant 1 : index
    %c0_12 = arith.constant 0 : index
    %25 = vector.load %arg5[%c1, %c0_12] : memref<2x16xf32, #tpu.memory_space<vmem>>, vector<1x16xf32>
    %26 = vector.broadcast %10 : vector<24x1xf32> to vector<24x16xf32>
    %27 = vector.broadcast %25 : vector<1x16xf32> to vector<24x16xf32>
    %28 = arith.mulf %26, %27 : vector<24x16xf32>
    %29 = arith.addf %24, %28 : vector<24x16xf32>
    %30 = vector.broadcast %7 : vector<24x1xf32> to vector<24x16xf32>
    %31 = arith.mulf %30, %20 : vector<24x16xf32>
    %32 = vector.broadcast %8 : vector<24x1xf32> to vector<24x16xf32>
    %33 = arith.addf %31, %32 : vector<24x16xf32>
    %34 = arith.mulf %33, %20 : vector<24x16xf32>
    %35 = arith.addf %34, %29 : vector<24x16xf32>
    %c0_13 = arith.constant 0 : index
    %c0_14 = arith.constant 0 : index
    %c0_15 = arith.constant 0 : index
    %36 = vector.load %arg7[%c0_13, %c0_14, %c0_15] : memref<1x24x16xf32, #tpu.memory_space<vmem>>, vector<1x24x16xf32>
    %37 = vector.shape_cast %36 : vector<1x24x16xf32> to vector<24x16xf32>
    %38 = vector.shape_cast %35 : vector<24x16xf32> to vector<1x24x16xf32>
    tpu.vector_store %arg7[%c0_13, %c0_14, %c0_15], %38 {strides = array<i32>} : memref<1x24x16xf32, #tpu.memory_space<vmem>>, vector<1x24x16xf32>,
    return
  }
  func.func @transform_0(%arg0: i32, %arg1: i32) -> (i32, i32, i32) {
    %c0_i32 = arith.constant 0 : i32
    %c0_i32_0 = arith.constant 0 : i32
    return %arg1, %c0_i32, %arg0 : i32, i32, i32
  }
  func.func @transform_1(%arg0: i32, %arg1: i32) -> (i32, i32) {
    %c0_i32 = arith.constant 0 : i32
    %c0_i32_0 = arith.constant 0 : i32
    %c0_i32_1 = arith.constant 0 : i32
    return %c0_i32, %c0_i32_0 : i32, i32
  }
  func.func @transform_2(%arg0: i32, %arg1: i32) -> (i32, i32) {
    %c0_i32 = arith.constant 0 : i32
    %c0_i32_0 = arith.constant 0 : i32
    %c0_i32_1 = arith.constant 0 : i32
    return %c0_i32, %c0_i32_0 : i32, i32
  }
  func.func @transform_3(%arg0: i32, %arg1: i32) -> (i32, i32) {
    %c0_i32 = arith.constant 0 : i32
    %c0_i32_0 = arith.constant 0 : i32
    return %c0_i32, %arg0 : i32, i32
  }
  func.func @transform_4(%arg0: i32, %arg1: i32) -> (i32, i32, i32) {
    %c0_i32 = arith.constant 0 : i32
    %c0_i32_0 = arith.constant 0 : i32
    return %arg1, %c0_i32, %arg0 : i32, i32, i32
  }
  func.func @transform_5(%arg0: i32, %arg1: i32) -> (i32, i32, i32) {
    %c0_i32 = arith.constant 0 : i32
    %c0_i32_0 = arith.constant 0 : i32
    return %arg1, %c0_i32, %arg0 : i32, i32, i32
  }
}

module attributes {stable_mosaic.version = 11 : i64} {
  func.func @_detect_layer_kernel(%arg0: i32, %arg1: i32, %arg2: memref<1x16x64xf32, #tpu.memory_space<vmem>>, %arg3: memref<24x16xbf16, #tpu.memory_space<vmem>>, %arg4: memref<24x8xf32, #tpu.memory_space<vmem>>, %arg5: memref<2x64xf32, #tpu.memory_space<vmem>>, %arg6: memref<1x24x64xf32, #tpu.memory_space<vmem>>, %arg7: memref<1x24x64xf32, #tpu.memory_space<vmem>>) attributes {dimension_semantics = [#tpu.dimension_semantics<parallel>, #tpu.dimension_semantics<parallel>], iteration_bounds = array<i64: 1, 2>, scalar_prefetch = 0 : i64, scratch_operands = 0 : i64, tpu.core_type = #tpu.core_type<tc>, window_params = [{transform_indices = @transform_0, window_bounds = array<i64: 1, 16, 64>}, {pipeline_mode = #tpu.pipeline_mode<synchronous>, transform_indices = @transform_1, window_bounds = array<i64: 24, 16>}, {pipeline_mode = #tpu.pipeline_mode<synchronous>, transform_indices = @transform_2, window_bounds = array<i64: 24, 8>}, {transform_indices = @transform_3, window_bounds = array<i64: 2, 64>}, {transform_indices = @transform_4, window_bounds = array<i64: 1, 24, 64>}, {transform_indices = @transform_5, window_bounds = array<i64: 1, 24, 64>}]} {
    %c0 = arith.constant 0 : index
    %c0_0 = arith.constant 0 : index
    %c0_1 = arith.constant 0 : index
    %0 = vector.load %arg2[%c0, %c0_0, %c0_1] : memref<1x16x64xf32, #tpu.memory_space<vmem>>, vector<1x16x64xf32>
    %1 = vector.shape_cast %0 : vector<1x16x64xf32> to vector<16x64xf32>
    %2 = arith.truncf %1 : vector<16x64xf32> to vector<16x64xbf16>
    %c0_2 = arith.constant 0 : index
    %c0_3 = arith.constant 0 : index
    %3 = vector.load %arg3[%c0_2, %c0_3] : memref<24x16xbf16, #tpu.memory_space<vmem>>, vector<24x16xbf16>
    %cst = arith.constant dense<0.000000e+00> : vector<24x64xf32>
    %4 = tpu.matmul %3, %2, %cst {dimension_numbers = #tpu.dot_dimension_numbers<[1], [0], [0], [1], [0, 0, 1, 1], [], []>} : vector<24x16xbf16>, vector<16x64xbf16>, vector<24x64xf32> -> vector<24x64xf32>
    %c0_4 = arith.constant 0 : index
    %c0_5 = arith.constant 0 : index
    %5 = vector.load %arg4[%c0_4, %c0_5] : memref<24x8xf32, #tpu.memory_space<vmem>>, vector<24x8xf32>
    %6 = vector.extract_strided_slice %5 {offsets = [0, 0], sizes = [24, 1], strides = [1, 1]} : vector<24x8xf32> to vector<24x1xf32>
    %7 = vector.extract_strided_slice %5 {offsets = [0, 1], sizes = [24, 1], strides = [1, 1]} : vector<24x8xf32> to vector<24x1xf32>
    %8 = vector.extract_strided_slice %5 {offsets = [0, 2], sizes = [24, 1], strides = [1, 1]} : vector<24x8xf32> to vector<24x1xf32>
    %9 = vector.extract_strided_slice %5 {offsets = [0, 3], sizes = [24, 1], strides = [1, 1]} : vector<24x8xf32> to vector<24x1xf32>
    %10 = vector.extract_strided_slice %5 {offsets = [0, 4], sizes = [24, 1], strides = [1, 1]} : vector<24x8xf32> to vector<24x1xf32>
    %11 = vector.broadcast %6 : vector<24x1xf32> to vector<24x64xf32>
    %12 = arith.addf %4, %11 : vector<24x64xf32>
    %c0_6 = arith.constant 0 : index
    %c0_7 = arith.constant 0 : index
    %c0_8 = arith.constant 0 : index
    %13 = vector.load %arg6[%c0_6, %c0_7, %c0_8] : memref<1x24x64xf32, #tpu.memory_space<vmem>>, vector<1x24x64xf32>
    %14 = vector.shape_cast %13 : vector<1x24x64xf32> to vector<24x64xf32>
    %15 = vector.shape_cast %12 : vector<24x64xf32> to vector<1x24x64xf32>
    tpu.vector_store %arg6[%c0_6, %c0_7, %c0_8], %15 {strides = array<i32>} : memref<1x24x64xf32, #tpu.memory_space<vmem>>, vector<1x24x64xf32>,
    %16 = arith.negf %12 : vector<24x64xf32>
    %17 = math.exp %16 : vector<24x64xf32>
    %cst_9 = arith.constant 1.000000e+00 : f32
    %18 = vector.broadcast %cst_9 : f32 to vector<24x64xf32>
    %19 = arith.addf %18, %17 : vector<24x64xf32>
    %20 = arith.divf %18, %19 : vector<24x64xf32>
    %c0_10 = arith.constant 0 : index
    %c0_11 = arith.constant 0 : index
    %21 = vector.load %arg5[%c0_10, %c0_11] : memref<2x64xf32, #tpu.memory_space<vmem>>, vector<1x64xf32>
    %22 = vector.broadcast %9 : vector<24x1xf32> to vector<24x64xf32>
    %23 = vector.broadcast %21 : vector<1x64xf32> to vector<24x64xf32>
    %24 = arith.mulf %22, %23 : vector<24x64xf32>
    %c1 = arith.constant 1 : index
    %c0_12 = arith.constant 0 : index
    %25 = vector.load %arg5[%c1, %c0_12] : memref<2x64xf32, #tpu.memory_space<vmem>>, vector<1x64xf32>
    %26 = vector.broadcast %10 : vector<24x1xf32> to vector<24x64xf32>
    %27 = vector.broadcast %25 : vector<1x64xf32> to vector<24x64xf32>
    %28 = arith.mulf %26, %27 : vector<24x64xf32>
    %29 = arith.addf %24, %28 : vector<24x64xf32>
    %30 = vector.broadcast %7 : vector<24x1xf32> to vector<24x64xf32>
    %31 = arith.mulf %30, %20 : vector<24x64xf32>
    %32 = vector.broadcast %8 : vector<24x1xf32> to vector<24x64xf32>
    %33 = arith.addf %31, %32 : vector<24x64xf32>
    %34 = arith.mulf %33, %20 : vector<24x64xf32>
    %35 = arith.addf %34, %29 : vector<24x64xf32>
    %c0_13 = arith.constant 0 : index
    %c0_14 = arith.constant 0 : index
    %c0_15 = arith.constant 0 : index
    %36 = vector.load %arg7[%c0_13, %c0_14, %c0_15] : memref<1x24x64xf32, #tpu.memory_space<vmem>>, vector<1x24x64xf32>
    %37 = vector.shape_cast %36 : vector<1x24x64xf32> to vector<24x64xf32>
    %38 = vector.shape_cast %35 : vector<24x64xf32> to vector<1x24x64xf32>
    tpu.vector_store %arg7[%c0_13, %c0_14, %c0_15], %38 {strides = array<i32>} : memref<1x24x64xf32, #tpu.memory_space<vmem>>, vector<1x24x64xf32>,
    return
  }
  func.func @transform_0(%arg0: i32, %arg1: i32) -> (i32, i32, i32) {
    %c0_i32 = arith.constant 0 : i32
    %c0_i32_0 = arith.constant 0 : i32
    return %arg1, %c0_i32, %arg0 : i32, i32, i32
  }
  func.func @transform_1(%arg0: i32, %arg1: i32) -> (i32, i32) {
    %c0_i32 = arith.constant 0 : i32
    %c0_i32_0 = arith.constant 0 : i32
    %c0_i32_1 = arith.constant 0 : i32
    return %c0_i32, %c0_i32_0 : i32, i32
  }
  func.func @transform_2(%arg0: i32, %arg1: i32) -> (i32, i32) {
    %c0_i32 = arith.constant 0 : i32
    %c0_i32_0 = arith.constant 0 : i32
    %c0_i32_1 = arith.constant 0 : i32
    return %c0_i32, %c0_i32_0 : i32, i32
  }
  func.func @transform_3(%arg0: i32, %arg1: i32) -> (i32, i32) {
    %c0_i32 = arith.constant 0 : i32
    %c0_i32_0 = arith.constant 0 : i32
    return %c0_i32, %arg0 : i32, i32
  }
  func.func @transform_4(%arg0: i32, %arg1: i32) -> (i32, i32, i32) {
    %c0_i32 = arith.constant 0 : i32
    %c0_i32_0 = arith.constant 0 : i32
    return %arg1, %c0_i32, %arg0 : i32, i32, i32
  }
  func.func @transform_5(%arg0: i32, %arg1: i32) -> (i32, i32, i32) {
    %c0_i32 = arith.constant 0 : i32
    %c0_i32_0 = arith.constant 0 : i32
    return %arg1, %c0_i32, %arg0 : i32, i32, i32
  }
}

</mosaic_0001>

<llo_original>
// kernel: _lambda_.5
$region0: #{_lambda_.5}
  #allocation0 [shape = 'u32[]', space=smem, size = 0x4, offset = 0x4, fixed_abs, tag = 'smem constant byte address 0x4 - core index']
  #allocation1 [shape = 'u32[72,128]{1,0:T(1,128)}', space=vmem, size = 0x9000, scoped, tag = 'internal scratch']
  %s0 = inlined_call_operand.vmem [shape: f32[2,32,16], index: 0, kind: input, shape index: {}]
  %s1 = inlined_call_operand.vmem [shape: bf16[24,32], index: 1, kind: input, shape index: {}]
  %s2 = inlined_call_operand.vmem [shape: f32[24,8], index: 2, kind: input, shape index: {}]
  %s3 = inlined_call_operand.vmem [shape: f32[2,16], index: 3, kind: input, shape index: {}]
  %s4 = inlined_call_operand.vmem [shape: f32[2,24,16], index: 4, kind: output, shape index: {0}]
  %s5 = inlined_call_operand.vmem [shape: f32[2,24,16], index: 5, kind: output, shape index: {1}]
  %6 = xla_tuple %s4, %s5
  %s7 = sld [smem:[#allocation0]]
  $region57: #{_lambda_.5} parent=0
    _
  %s9 = ssub.s32 1, %s7
  %s10 = scalar_select 0, %s9, %s7
  loop: start=0, step=1, limit=4
  $region2: #{_lambda_.5} parent=0 // loop_pre_header
    _
  $region3: #{_lambda_.5} parent=0 // loop_header
    %s12 = sphi 0, %s16
    %p13 = scmp.ge.s32.totalorder %s12, 4
    %s19 = sphi 0, %s31
    %s20 = sphi 0, %s27
    %s21 = sphi 0, %s19
    %s22 = sphi 0, %s20
    %s23 = sphi 0, %s21
    %s24 = sphi 0, %s22
    %s36 = sphi 0, %s38
    %s39 = sphi 0, %s36
    %s40 = sphi 0, %s39
    %s56 = sphi 0, %s40
    %s60 = sphi 0, %s60
    %s62 = sphi 0, %s60
    %s63 = sphi 0, %s62
    %s77 = sphi 0, %s63
    %s81 = sphi 0, %s81
    %s83 = sphi 0, %s81
    %s84 = sphi 0, %s83
    %s98 = sphi 0, %s84
    %s104 = sphi 0, %s106
    %s107 = sphi 0, %s104
    %s108 = sphi 0, %s107
    %s124 = sphi 0, %s108
    %s132 = sphi 0, %s134
    %s135 = sphi 0, %s132
    %s136 = sphi 0, %s135
    %s152 = sphi 0, %s136
    %s160 = sphi 0, %s162
    %s163 = sphi 0, %s160
    %s164 = sphi 0, %s163
    %s180 = sphi 0, %s164
  $region4: #{_lambda_.5} parent=0 // loop_header_branch
    %15 = sbr.rel (%p13) target = $region8
  $region5: #{_lambda_.5} parent=0 // loop_body
    %s17 = ssub.s32 %s12, 1
    %s18 = ssub.s32 %s12, 2
    %s25 = sadd.s32 1, %s20
    %p26 = scmp.ge.s32.totalorder %s25, 2
    %s27 = scalar_select %p26, 0, %s25
    %s28 = sadd.s32 1, %s19
    %s29 = scalar_select %p26, %s28, %s19
    %p30 = scmp.ge.s32.totalorder %s29, 1
    %s31 = scalar_select %p30, 0, %s29
    %s32 = ssub.s32 %s20, %s27
    %s33 = ssub.s32 %s19, %s31
    %s34 = sor.u32 %s32, %s33
    %p35 = scmp.eq.s32.totalorder %s34, 0
    %s37 = sadd.s32 %s36, 1
    %s38 = scalar_select %p35, %s36, %s37
    %p41 = pneg %p35
    %p42 = scmp.eq.s32.totalorder %s12, 1
    %p43 = por %p41, %p42
    %p44 = scmp.ne.s32.totalorder %s36, %s39
    %p45 = scmp.eq.s32.totalorder %s12, 0
    %p46 = por %p44, %p45
    %p47 = scmp.ne.s32.totalorder %s36, %s39
    %p48 = scmp.eq.s32.totalorder %s17, 1
    %p49 = por %p47, %p48
    %p50 = scmp.ne.s32.totalorder %s39, %s40
    %p51 = scmp.eq.s32.totalorder %s17, 0
    %p52 = por %p50, %p51
    %p53 = scmp.ne.s32.totalorder %s39, %s40
    %p54 = scmp.eq.s32.totalorder %s18, 1
    %p55 = por %p53, %p54
    %p57 = scmp.ne.s32.totalorder %s40, %s56
    %p58 = scmp.eq.s32.totalorder %s18, 0
    %p59 = por %p57, %p58
    %s61 = sadd.s32 %s60, 1
    %p64 = scmp.eq.s32.totalorder %s12, 1
    %p65 = scmp.ne.s32.totalorder %s60, %s62
    %p66 = scmp.eq.s32.totalorder %s12, 0
    %p67 = por %p65, %p66
    %p68 = scmp.ne.s32.totalorder %s60, %s62
    %p69 = scmp.eq.s32.totalorder %s17, 1
    %p70 = por %p68, %p69
    %p71 = scmp.ne.s32.totalorder %s62, %s63
    %p72 = scmp.eq.s32.totalorder %s17, 0
    %p73 = por %p71, %p72
    %p74 = scmp.ne.s32.totalorder %s62, %s63
    %p75 = scmp.eq.s32.totalorder %s18, 1
    %p76 = por %p74, %p75
    %p78 = scmp.ne.s32.totalorder %s63, %s77
    %p79 = scmp.eq.s32.totalorder %s18, 0
    %p80 = por %p78, %p79
    %s82 = sadd.s32 %s81, 1
    %p85 = scmp.eq.s32.totalorder %s12, 1
    %p86 = scmp.ne.s32.totalorder %s81, %s83
    %p87 = scmp.eq.s32.totalorder %s12, 0
    %p88 = por %p86, %p87
    %p89 = scmp.ne.s32.totalorder %s81, %s83
    %p90 = scmp.eq.s32.totalorder %s17, 1
    %p91 = por %p89, %p90
    %p92 = scmp.ne.s32.totalorder %s83, %s84
    %p93 = scmp.eq.s32.totalorder %s17, 0
    %p94 = por %p92, %p93
    %p95 = scmp.ne.s32.totalorder %s83, %s84
    %p96 = scmp.eq.s32.totalorder %s18, 1
    %p97 = por %p95, %p96
    %p99 = scmp.ne.s32.totalorder %s84, %s98
    %p100 = scmp.eq.s32.totalorder %s18, 0
    %p101 = por %p99, %p100
    %s102 = ssub.s32 %s19, %s31
    %p103 = scmp.eq.s32.totalorder %s102, 0
    %s105 = sadd.s32 %s104, 1
    %s106 = scalar_select %p103, %s104, %s105
    %p109 = pneg %p103
    %p110 = scmp.eq.s32.totalorder %s12, 1
    %p111 = por %p109, %p110
    %p112 = scmp.ne.s32.totalorder %s104, %s107
    %p113 = scmp.eq.s32.totalorder %s12, 0
    %p114 = por %p112, %p113
    %p115 = scmp.ne.s32.totalorder %s104, %s107
    %p116 = scmp.eq.s32.totalorder %s17, 1
    %p117 = por %p115, %p116
    %p118 = scmp.ne.s32.totalorder %s107, %s108
    %p119 = scmp.eq.s32.totalorder %s17, 0
    %p120 = por %p118, %p119
    %p121 = scmp.ne.s32.totalorder %s107, %s108
    %p122 = scmp.eq.s32.totalorder %s18, 1
    %p123 = por %p121, %p122
    %p125 = scmp.ne.s32.totalorder %s108, %s124
    %p126 = scmp.eq.s32.totalorder %s18, 0
    %p127 = por %p125, %p126
    %s128 = ssub.s32 %s20, %s27
    %s129 = ssub.s32 %s19, %s31
    %s130 = sor.u32 %s128, %s129
    %p131 = scmp.eq.s32.totalorder %s130, 0
    %s133 = sadd.s32 %s132, 1
    %s134 = scalar_select %p131, %s132, %s133
    %p137 = pneg %p131
    %p138 = scmp.eq.s32.totalorder %s12, 1
    %p139 = por %p137, %p138
    %p140 = scmp.ne.s32.totalorder %s132, %s135
    %p141 = scmp.eq.s32.totalorder %s12, 0
    %p142 = por %p140, %p141
    %p143 = scmp.ne.s32.totalorder %s132, %s135
    %p144 = scmp.eq.s32.totalorder %s17, 1
    %p145 = por %p143, %p144
    %p146 = scmp.ne.s32.totalorder %s135, %s136
    %p147 = scmp.eq.s32.totalorder %s17, 0
    %p148 = por %p146, %p147
    %p149 = scmp.ne.s32.totalorder %s135, %s136
    %p150 = scmp.eq.s32.totalorder %s18, 1
    %p151 = por %p149, %p150
    %p153 = scmp.ne.s32.totalorder %s136, %s152
    %p154 = scmp.eq.s32.totalorder %s18, 0
    %p155 = por %p153, %p154
    %s156 = ssub.s32 %s20, %s27
    %s157 = ssub.s32 %s19, %s31
    %s158 = sor.u32 %s156, %s157
    %p159 = scmp.eq.s32.totalorder %s158, 0
    %s161 = sadd.s32 %s160, 1
    %s162 = scalar_select %p159, %s160, %s161
    %p165 = pneg %p159
    %p166 = scmp.eq.s32.totalorder %s12, 1
    %p167 = por %p165, %p166
    %p168 = scmp.ne.s32.totalorder %s160, %s163
    %p169 = scmp.eq.s32.totalorder %s12, 0
    %p170 = por %p168, %p169
    %p171 = scmp.ne.s32.totalorder %s160, %s163
    %p172 = scmp.eq.s32.totalorder %s17, 1
    %p173 = por %p171, %p172
    %p174 = scmp.ne.s32.totalorder %s163, %s164
    %p175 = scmp.eq.s32.totalorder %s17, 0
    %p176 = por %p174, %p175
    %p177 = scmp.ne.s32.totalorder %s163, %s164
    %p178 = scmp.eq.s32.totalorder %s18, 1
    %p179 = por %p177, %p178
    %p181 = scmp.ne.s32.totalorder %s164, %s180
    %p182 = scmp.eq.s32.totalorder %s18, 0
    %p183 = por %p181, %p182
    %p184 = scmp.le.s32.totalorder 1, %s12
    %p185 = scmp.lt.s32.totalorder %s12, 3
    %p186 = pnand %p184, %p185
    %p187 = pneg %p186
    // Predicated region
    $region9: #{_lambda_.5} parent=5 // pred_check
      _
    $region10: #{_lambda_.5} parent=5 // pred_check_branch
      %189 = sbr.rel (%p186) target = $region12
    $region11: #{_lambda_.5} parent=5 // pred_region
      %s190 = ssub.s32 %s12, 1
      // Predicated region
      $region13: #{_lambda_.5} parent=11 // pred_check
        %p191 = pneg %p73
      $region14: #{_lambda_.5} parent=11 // pred_check_branch
        %193 = sbr.rel (%p191) target = $region16
      $region15: #{_lambda_.5} parent=11 // pred_region
        _
      $region16: #{_lambda_.5} parent=11 // pred_fallthru
        _
      // Predicated region
      $region17: #{_lambda_.5} parent=11 // pred_check
        %p194 = pneg %p94
      $region18: #{_lambda_.5} parent=11 // pred_check_branch
        %196 = sbr.rel (%p194) target = $region20
      $region19: #{_lambda_.5} parent=11 // pred_region
        _
      $region20: #{_lambda_.5} parent=11 // pred_fallthru
        _
      // Predicated region
      $region21: #{_lambda_.5} parent=11 // pred_check
        %p197 = pneg %p120
      $region22: #{_lambda_.5} parent=11 // pred_check_branch
        %199 = sbr.rel (%p197) target = $region24
      $region23: #{_lambda_.5} parent=11 // pred_region
        %p200 = scmp.lt.s32.totalorder %s21, 0
        %s201 = scalar_select %p200, %s21, 0
        %s202 = smul.addr %s201, 2
        %s203 = scalar_lea.vmem %s3, %s202
      $region24: #{_lambda_.5} parent=11 // pred_fallthru
        _
    $region12: #{_lambda_.5} parent=5 // pred_fallthru
      _
    %p204 = scmp.lt.s32.totalorder %s12, 2
    // Predicated region
    $region25: #{_lambda_.5} parent=5 // pred_check
      %p205 = pneg %p204
    $region26: #{_lambda_.5} parent=5 // pred_check_branch
      %207 = sbr.rel (%p205) target = $region28
    $region27: #{_lambda_.5} parent=5 // pred_region
      // Predicated region
      $region29: #{_lambda_.5} parent=27 // pred_check
        %p208 = pneg %p46
      $region30: #{_lambda_.5} parent=27 // pred_check_branch
        %210 = sbr.rel (%p208) target = $region32
      $region31: #{_lambda_.5} parent=27 // pred_region
        %p211 = scmp.lt.s32.totalorder %s20, 1
        %s212 = scalar_select %p211, %s20, 1
        %p213 = scmp.lt.s32.totalorder %s19, 0
        %s214 = scalar_select %p213, %s19, 0
        %s215 = smul.addr %s212, 4
        %s216 = sadd.s32 %s214, %s215
        %s217 = smul.addr %s216, 8
        %s218 = scalar_lea.vmem %s0, %s217
      $region32: #{_lambda_.5} parent=27 // pred_fallthru
        _
    $region28: #{_lambda_.5} parent=5 // pred_fallthru
      _
    %p219 = scmp.le.s32.totalorder 1, %s12
    %p220 = scmp.lt.s32.totalorder %s12, 3
    %p221 = pnand %p219, %p220
    %p222 = pneg %p221
    // Predicated region
    $region33: #{_lambda_.5} parent=5 // pred_check
      _
    $region34: #{_lambda_.5} parent=5 // pred_check_branch
      %224 = sbr.rel (%p221) target = $region36
    $region35: #{_lambda_.5} parent=5 // pred_region
      %s225 = ssub.s32 %s12, 1
      %p226 = scmp.lt.s32.totalorder %s22, 1
      %s227 = scalar_select %p226, %s22, 1
      %p228 = scmp.lt.s32.totalorder %s21, 0
      %s229 = scalar_select %p228, %s21, 0
      %s230 = smul.addr %s227, 4
      %s231 = sadd.s32 %s229, %s230
      %s232 = smul.addr %s231, 8
      %s233 = scalar_lea.vmem %s0, %s232
      %p234 = pneg %p52
      %p235 = pneg %p49
      %p236 = pneg %p73
      %p237 = pneg %p70
      %p238 = pneg %p94
      %p239 = pneg %p91
      %p240 = scmp.lt.s32.totalorder %s21, 0
      %s241 = scalar_select %p240, %s21, 0
      %s242 = smul.addr %s241, 2
      %s243 = scalar_lea.vmem %s3, %s242
      %p244 = pneg %p120
      %p245 = pneg %p117
      %p246 = pneg %p148
      %p247 = pneg %p145
      %p248 = scmp.lt.s32.totalorder %s22, 1
      %s249 = scalar_select %p248, %s22, 1
      %p250 = scmp.lt.s32.totalorder %s21, 0
      %s251 = scalar_select %p250, %s21, 0
      %s252 = smul.addr %s249, 3
      %s253 = sadd.s32 %s251, %s252
      %s254 = smul.addr %s253, 8
      %s255 = scalar_lea.vmem %s4, %s254
      %p256 = pneg %p176
      %p257 = pneg %p173
      %p258 = scmp.lt.s32.totalorder %s22, 1
      %s259 = scalar_select %p258, %s22, 1
      %p260 = scmp.lt.s32.totalorder %s21, 0
      %s261 = scalar_select %p260, %s21, 0
      %s262 = smul.addr %s259, 3
      %s263 = sadd.s32 %s261, %s262
      %s264 = smul.addr %s263, 8
      %s265 = scalar_lea.vmem %s5, %s264
      %p266 = scmp.lt.s32.totalorder %s22, 1
      %s267 = scalar_select %p266, %s22, 1
      %p268 = scmp.lt.s32.totalorder %s21, 0
      %s269 = scalar_select %p268, %s21, 0
      %s270 = smul.addr %s267, 4
      %s271 = sadd.s32 %s269, %s270
      %s272 = smul.addr %s271, 8
      %s273 = scalar_lea.vmem %s0, %s272
      %p274 = scmp.lt.s32.totalorder %s21, 0
      %s275 = scalar_select %p274, %s21, 0
      %s276 = smul.addr %s275, 2
      %s277 = scalar_lea.vmem %s3, %s276
      %p278 = scmp.lt.s32.totalorder %s22, 1
      %s279 = scalar_select %p278, %s22, 1
      %p280 = scmp.lt.s32.totalorder %s21, 0
      %s281 = scalar_select %p280, %s21, 0
      %s282 = smul.addr %s279, 3
      %s283 = sadd.s32 %s281, %s282
      %s284 = smul.addr %s283, 8
      %s285 = scalar_lea.vmem %s4, %s284
      %p286 = scmp.lt.s32.totalorder %s22, 1
      %s287 = scalar_select %p286, %s22, 1
      %p288 = scmp.lt.s32.totalorder %s21, 0
      %s289 = scalar_select %p288, %s21, 0
      %s290 = smul.addr %s287, 3
      %s291 = sadd.s32 %s289, %s290
      %s292 = smul.addr %s291, 8
      %s293 = scalar_lea.vmem %s5, %s292
      %v295 = vld [vmem:[%s273] sm:$0xff]
      %v296 = vld [vmem:[%s273 + $0x8] sm:$0xff]
      %v297 = vld [vmem:[%s273 + $0x10] sm:$0xff]
      %v298 = vld [vmem:[%s273 + $0x18] sm:$0xff]
      %v299 = vpack.c.bf16 %v296, %v295
      %v300 = vpack.c.bf16 %v298, %v297
      %v301 = vld [vmem:[%s1] sm:$0xf]
      %v302 = vld [vmem:[%s1 + $0x4] sm:$0xf]
      %v303 = vld [vmem:[%s1 + $0x8] sm:$0xf]
      %v304 = vld [vmem:[%s2] sm:$0xff]
      %v305 = vld [vmem:[%s2 + $0x8] sm:$0xff]
      %v306 = vld [vmem:[%s2 + $0x10] sm:$0xff]
      %308 = vset.pattern.permute.xlu0 0
      %309 = vperm.xlu0 %308, %v304
      %v310 = vpop.permute.xlu0 %309
      %313 = vset.pattern.permute.xlu0 0
      %314 = vperm.xlu0 %313, %v305
      %v315 = vpop.permute.xlu0 %314
      %318 = vset.pattern.permute.xlu0 0
      %319 = vperm.xlu0 %318, %v306
      %v320 = vpop.permute.xlu0 %319
      %v325 = vunpack.c.l.b16 %v301
      %v326 = vunpack.c.l.b16 %v302
      %v327 = vunpack.c.l.b16 %v303
      %v328 = vpack.c.b16 %v326, %v325
      %v329 = vpack.c.b16 %v327, %v327
      %vm330 = vcmask 261120
      %v332 = vsel %vm330, %v328, 0
      %v335 = vsel %vm330, %v329, 0
      %337 = vmatpush.bf16.msra.mxu0 0
      %338 = vmatpush.bf16.msra.mxu0 0
      %339 = vmatpush.bf16.msra.mxu0 0
      %340 = vmatpush.bf16.msra.mxu0 0
      %341 = vmatpush.bf16.msra.mxu0 0
      %342 = vmatpush.bf16.msra.mxu0 0
      %343 = vmatpush.bf16.msra.mxu0 %v300
      %344 = vmatpush.bf16.msra.mxu0 %v299
      %345 = vmatmul.bf16.gmra.mxu0 %v332
      %v346 = vpop.f32.mrf.mxu0
      %v347 = vadd.f32 %v310, %v346
      %v348 = vpop.f32.mrf.mxu0
      %v349 = vadd.f32 %v315, %v348
      %350 = vmatmul.bf16.gmra.mxu0 %v335
      %v351 = vpop.f32.mrf.mxu0
      %v352 = vadd.f32 %v320, %v351
      %v353 = vpop.f32.mrf.mxu0
      %354 = vdwg.mxu0
      %vm355 = vcmask 130048
      %356 = vst.msk [vmem:[%s285] sm:$0xff] %vm355, %v347
      %357 = vst.msk [vmem:[%s285 + $0x8] sm:$0xff] %vm355, %v349
      %358 = vst.msk [vmem:[%s285 + $0x10] sm:$0xff] %vm355, %v352
      %v359 = vxor.u32 %v347, 2147483648
      %v360 = vxor.u32 %v349, 2147483648
      %v361 = vxor.u32 %v352, 2147483648
      %v362 = vmul.f32 %v359, 1.442695
      %v363 = vpow.pop %v362
      %v364 = vmul.f32 %v360, 1.442695
      %v365 = vpow.pop %v364
      %v366 = vmul.f32 %v361, 1.442695
      %v367 = vpow.pop %v366
      %v368 = vadd.f32 %v363, 1.0
      %v369 = vadd.f32 %v365, 1.0
      %v370 = vadd.f32 %v367, 1.0
      %v371 = vrcp.pop %v368
      %v372 = vmul.f32 %v368, %v371
      %v373 = vsub.f32 1.0, %v372
      %v374 = vmul.f32 %v371, %v373
      %v375 = vadd.f32 %v371, %v374
      %vm376 = vweird.f32 %v368
      %vm377 = vweird.f32 %v371
      %vm378 = vmor %vm376, %vm377
      %v379 = vsel %vm378, %v371, %v375
      %v380 = vand.u32 2147483647, %v368
      %vm381 = vcmp.eq.f32.partialorder %v380, 8.507059e+37
      %v382 = vand.u32 %v368, 2147483648
      %v383 = vor.u32 1.1754944e-38, %v382
      %v384 = vsel %vm381, %v383, %v379
      %v385 = vmul.f32 1.0, %v384
      %v386 = vrcp.pop %v369
      %v387 = vmul.f32 %v369, %v386
      %v388 = vsub.f32 1.0, %v387
      %v389 = vmul.f32 %v386, %v388
      %v390 = vadd.f32 %v386, %v389
      %vm391 = vweird.f32 %v369
      %vm392 = vweird.f32 %v386
      %vm393 = vmor %vm391, %vm392
      %v394 = vsel %vm393, %v386, %v390
      %v395 = vand.u32 2147483647, %v369
      %vm396 = vcmp.eq.f32.partialorder %v395, 8.507059e+37
      %v397 = vand.u32 %v369, 2147483648
      %v398 = vor.u32 1.1754944e-38, %v397
      %v399 = vsel %vm396, %v398, %v394
      %v400 = vmul.f32 1.0, %v399
      %v401 = vrcp.pop %v370
      %v402 = vmul.f32 %v370, %v401
      %v403 = vsub.f32 1.0, %v402
      %v404 = vmul.f32 %v401, %v403
      %v405 = vadd.f32 %v401, %v404
      %vm406 = vweird.f32 %v370
      %vm407 = vweird.f32 %v401
      %vm408 = vmor %vm406, %vm407
      %v409 = vsel %vm408, %v401, %v405
      %v410 = vand.u32 2147483647, %v370
      %vm411 = vcmp.eq.f32.partialorder %v410, 8.507059e+37
      %v412 = vand.u32 %v370, 2147483648
      %v413 = vor.u32 1.1754944e-38, %v412
      %v414 = vsel %vm411, %v413, %v409
      %v415 = vmul.f32 1.0, %v414
      %v416 = vld [vmem:[%s277] sm:$0x1]
      %417 = vset.pattern.permute.xlu0 3
      %418 = vperm.xlu0 %417, %v304
      %v419 = vpop.permute.xlu0 %418
      %421 = vset.pattern.permute.xlu0 3
      %422 = vperm.xlu0 %421, %v305
      %v423 = vpop.permute.xlu0 %422
      %425 = vset.pattern.permute.xlu0 3
      %426 = vperm.xlu0 %425, %v306
      %v427 = vpop.permute.xlu0 %426
      %v429 = vperm.slane %v416, 0
      %v430 = vmul.f32 %v419, %v429
      %v431 = vmul.f32 %v423, %v429
      %v432 = vmul.f32 %v427, %v429
      %v433 = vld [vmem:[%s277 + $0x1] sm:$0x1]
      %434 = vset.pattern.permute.xlu0 4
      %435 = vperm.xlu0 %434, %v304
      %v436 = vpop.permute.xlu0 %435
      %438 = vset.pattern.permute.xlu0 4
      %439 = vperm.xlu0 %438, %v305
      %v440 = vpop.permute.xlu0 %439
      %442 = vset.pattern.permute.xlu0 4
      %443 = vperm.xlu0 %442, %v306
      %v444 = vpop.permute.xlu0 %443
      %v446 = vperm.slane %v433, 0
      %v447 = vmul.f32 %v436, %v446
      %v448 = vmul.f32 %v440, %v446
      %v449 = vmul.f32 %v444, %v446
      %v450 = vadd.f32 %v430, %v447
      %v451 = vadd.f32 %v431, %v448
      %v452 = vadd.f32 %v432, %v449
      %453 = vset.pattern.permute.xlu0 1
      %454 = vperm.xlu0 %453, %v304
      %v455 = vpop.permute.xlu0 %454
      %457 = vset.pattern.permute.xlu0 1
      %458 = vperm.xlu0 %457, %v305
      %v459 = vpop.permute.xlu0 %458
      %461 = vset.pattern.permute.xlu0 1
      %462 = vperm.xlu0 %461, %v306
      %v463 = vpop.permute.xlu0 %462
      %v465 = vmul.f32 %v455, %v385
      %v466 = vmul.f32 %v459, %v400
      %v467 = vmul.f32 %v463, %v415
      %468 = vset.pattern.permute.xlu0 2
      %469 = vperm.xlu0 %468, %v304
      %v470 = vpop.permute.xlu0 %469
      %472 = vset.pattern.permute.xlu0 2
      %473 = vperm.xlu0 %472, %v305
      %v474 = vpop.permute.xlu0 %473
      %476 = vset.pattern.permute.xlu0 2
      %477 = vperm.xlu0 %476, %v306
      %v478 = vpop.permute.xlu0 %477
      %v480 = vadd.f32 %v465, %v470
      %v481 = vadd.f32 %v466, %v474
      %v482 = vadd.f32 %v467, %v478
      %v483 = vmul.f32 %v480, %v385
      %v484 = vmul.f32 %v481, %v400
      %v485 = vmul.f32 %v482, %v415
      %v486 = vadd.f32 %v483, %v450
      %v487 = vadd.f32 %v484, %v451
      %v488 = vadd.f32 %v485, %v452
      %489 = vst.msk [vmem:[%s293] sm:$0xff] %vm355, %v486
      %490 = vst.msk [vmem:[%s293 + $0x8] sm:$0xff] %vm355, %v487
      %491 = vst.msk [vmem:[%s293 + $0x10] sm:$0xff] %vm355, %v488
      %p492 = scmp.lt.s32.totalorder %s22, 1
      %s493 = scalar_select %p492, %s22, 1
      %p494 = scmp.lt.s32.totalorder %s21, 0
      %s495 = scalar_select %p494, %s21, 0
      %s496 = smul.addr %s493, 3
      %s497 = sadd.s32 %s495, %s496
      %s498 = smul.addr %s497, 8
      %s499 = scalar_lea.vmem %s4, %s498
      %p500 = scmp.lt.s32.totalorder %s22, 1
      %s501 = scalar_select %p500, %s22, 1
      %p502 = scmp.lt.s32.totalorder %s21, 0
      %s503 = scalar_select %p502, %s21, 0
      %s504 = smul.addr %s501, 3
      %s505 = sadd.s32 %s503, %s504
      %s506 = smul.addr %s505, 8
      %s507 = scalar_lea.vmem %s5, %s506
      // Predicated region
      $region37: #{_lambda_.5} parent=35 // pred_check
        %p508 = pneg %p145
      $region38: #{_lambda_.5} parent=35 // pred_check_branch
        %510 = sbr.rel (%p508) target = $region40
      $region39: #{_lambda_.5} parent=35 // pred_region
        _
      $region40: #{_lambda_.5} parent=35 // pred_fallthru
        _
      // Predicated region
      $region41: #{_lambda_.5} parent=35 // pred_check
        %p511 = pneg %p173
      $region42: #{_lambda_.5} parent=35 // pred_check_branch
        %513 = sbr.rel (%p511) target = $region44
      $region43: #{_lambda_.5} parent=35 // pred_region
        _
      $region44: #{_lambda_.5} parent=35 // pred_fallthru
        _
    $region36: #{_lambda_.5} parent=5 // pred_fallthru
      _
    %p514 = scmp.le.s32.totalorder 2, %s12
    // Predicated region
    $region45: #{_lambda_.5} parent=5 // pred_check
      %p515 = pneg %p514
    $region46: #{_lambda_.5} parent=5 // pred_check_branch
      %517 = sbr.rel (%p515) target = $region48
    $region47: #{_lambda_.5} parent=5 // pred_region
      %s518 = ssub.s32 %s12, 2
      // Predicated region
      $region49: #{_lambda_.5} parent=47 // pred_check
        %p519 = pneg %p151
      $region50: #{_lambda_.5} parent=47 // pred_check_branch
        %521 = sbr.rel (%p519) target = $region52
      $region51: #{_lambda_.5} parent=47 // pred_region
        %p522 = scmp.lt.s32.totalorder %s24, 1
        %s523 = scalar_select %p522, %s24, 1
        %p524 = scmp.lt.s32.totalorder %s23, 0
        %s525 = scalar_select %p524, %s23, 0
        %s526 = smul.addr %s523, 3
        %s527 = sadd.s32 %s525, %s526
        %s528 = smul.addr %s527, 8
        %s529 = scalar_lea.vmem %s4, %s528
      $region52: #{_lambda_.5} parent=47 // pred_fallthru
        _
      // Predicated region
      $region53: #{_lambda_.5} parent=47 // pred_check
        %p530 = pneg %p179
      $region54: #{_lambda_.5} parent=47 // pred_check_branch
        %532 = sbr.rel (%p530) target = $region56
      $region55: #{_lambda_.5} parent=47 // pred_region
        %p533 = scmp.lt.s32.totalorder %s24, 1
        %s534 = scalar_select %p533, %s24, 1
        %p535 = scmp.lt.s32.totalorder %s23, 0
        %s536 = scalar_select %p535, %s23, 0
        %s537 = smul.addr %s534, 3
        %s538 = sadd.s32 %s536, %s537
        %s539 = smul.addr %s538, 8
        %s540 = scalar_lea.vmem %s5, %s539
      $region56: #{_lambda_.5} parent=47 // pred_fallthru
        _
    $region48: #{_lambda_.5} parent=5 // pred_fallthru
      _
  $region6: #{_lambda_.5} parent=0 // loop_footer
    %s16 = sadd.s32 1, %s12
  $region7: #{_lambda_.5} parent=0 // loop_footer_branch
    %11 = sbr.rel target = $region3
  $region8: #{_lambda_.5} parent=0 // loop_exit
    _

// kernel: _lambda_.3
$region0: #{_lambda_.3}
  #allocation0 [shape = 'u32[]', space=smem, size = 0x4, offset = 0x4, fixed_abs, tag = 'smem constant byte address 0x4 - core index']
  #allocation1 [shape = 'u32[72,128]{1,0:T(1,128)}', space=vmem, size = 0x9000, scoped, tag = 'internal scratch']
  %s0 = inlined_call_operand.vmem [shape: f32[2,8,256], index: 0, kind: input, shape index: {}]
  %s1 = inlined_call_operand.vmem [shape: bf16[24,8], index: 1, kind: input, shape index: {}]
  %s2 = inlined_call_operand.vmem [shape: f32[24,8], index: 2, kind: input, shape index: {}]
  %s3 = inlined_call_operand.vmem [shape: f32[2,256], index: 3, kind: input, shape index: {}]
  %s4 = inlined_call_operand.vmem [shape: f32[2,24,256], index: 4, kind: output, shape index: {0}]
  %s5 = inlined_call_operand.vmem [shape: f32[2,24,256], index: 5, kind: output, shape index: {1}]
  %6 = xla_tuple %s4, %s5
  %s7 = sld [smem:[#allocation0]]
  $region57: #{_lambda_.3} parent=0
    _
  %s9 = ssub.s32 1, %s7
  %s10 = scalar_select 0, %s9, %s7
  loop: start=0, step=1, limit=4
  $region2: #{_lambda_.3} parent=0 // loop_pre_header
    _
  $region3: #{_lambda_.3} parent=0 // loop_header
    %s12 = sphi 0, %s16
    %p13 = scmp.ge.s32.totalorder %s12, 4
    %s19 = sphi 0, %s31
    %s20 = sphi 0, %s27
    %s21 = sphi 0, %s19
    %s22 = sphi 0, %s20
    %s23 = sphi 0, %s21
    %s24 = sphi 0, %s22
    %s36 = sphi 0, %s38
    %s39 = sphi 0, %s36
    %s40 = sphi 0, %s39
    %s56 = sphi 0, %s40
    %s60 = sphi 0, %s60
    %s62 = sphi 0, %s60
    %s63 = sphi 0, %s62
    %s77 = sphi 0, %s63
    %s81 = sphi 0, %s81
    %s83 = sphi 0, %s81
    %s84 = sphi 0, %s83
    %s98 = sphi 0, %s84
    %s104 = sphi 0, %s106
    %s107 = sphi 0, %s104
    %s108 = sphi 0, %s107
    %s124 = sphi 0, %s108
    %s132 = sphi 0, %s134
    %s135 = sphi 0, %s132
    %s136 = sphi 0, %s135
    %s152 = sphi 0, %s136
    %s160 = sphi 0, %s162
    %s163 = sphi 0, %s160
    %s164 = sphi 0, %s163
    %s180 = sphi 0, %s164
  $region4: #{_lambda_.3} parent=0 // loop_header_branch
    %15 = sbr.rel (%p13) target = $region8
  $region5: #{_lambda_.3} parent=0 // loop_body
    %s17 = ssub.s32 %s12, 1
    %s18 = ssub.s32 %s12, 2
    %s25 = sadd.s32 1, %s20
    %p26 = scmp.ge.s32.totalorder %s25, 2
    %s27 = scalar_select %p26, 0, %s25
    %s28 = sadd.s32 1, %s19
    %s29 = scalar_select %p26, %s28, %s19
    %p30 = scmp.ge.s32.totalorder %s29, 1
    %s31 = scalar_select %p30, 0, %s29
    %s32 = ssub.s32 %s20, %s27
    %s33 = ssub.s32 %s19, %s31
    %s34 = sor.u32 %s32, %s33
    %p35 = scmp.eq.s32.totalorder %s34, 0
    %s37 = sadd.s32 %s36, 1
    %s38 = scalar_select %p35, %s36, %s37
    %p41 = pneg %p35
    %p42 = scmp.eq.s32.totalorder %s12, 1
    %p43 = por %p41, %p42
    %p44 = scmp.ne.s32.totalorder %s36, %s39
    %p45 = scmp.eq.s32.totalorder %s12, 0
    %p46 = por %p44, %p45
    %p47 = scmp.ne.s32.totalorder %s36, %s39
    %p48 = scmp.eq.s32.totalorder %s17, 1
    %p49 = por %p47, %p48
    %p50 = scmp.ne.s32.totalorder %s39, %s40
    %p51 = scmp.eq.s32.totalorder %s17, 0
    %p52 = por %p50, %p51
    %p53 = scmp.ne.s32.totalorder %s39, %s40
    %p54 = scmp.eq.s32.totalorder %s18, 1
    %p55 = por %p53, %p54
    %p57 = scmp.ne.s32.totalorder %s40, %s56
    %p58 = scmp.eq.s32.totalorder %s18, 0
    %p59 = por %p57, %p58
    %s61 = sadd.s32 %s60, 1
    %p64 = scmp.eq.s32.totalorder %s12, 1
    %p65 = scmp.ne.s32.totalorder %s60, %s62
    %p66 = scmp.eq.s32.totalorder %s12, 0
    %p67 = por %p65, %p66
    %p68 = scmp.ne.s32.totalorder %s60, %s62
    %p69 = scmp.eq.s32.totalorder %s17, 1
    %p70 = por %p68, %p69
    %p71 = scmp.ne.s32.totalorder %s62, %s63
    %p72 = scmp.eq.s32.totalorder %s17, 0
    %p73 = por %p71, %p72
    %p74 = scmp.ne.s32.totalorder %s62, %s63
    %p75 = scmp.eq.s32.totalorder %s18, 1
    %p76 = por %p74, %p75
    %p78 = scmp.ne.s32.totalorder %s63, %s77
    %p79 = scmp.eq.s32.totalorder %s18, 0
    %p80 = por %p78, %p79
    %s82 = sadd.s32 %s81, 1
    %p85 = scmp.eq.s32.totalorder %s12, 1
    %p86 = scmp.ne.s32.totalorder %s81, %s83
    %p87 = scmp.eq.s32.totalorder %s12, 0
    %p88 = por %p86, %p87
    %p89 = scmp.ne.s32.totalorder %s81, %s83
    %p90 = scmp.eq.s32.totalorder %s17, 1
    %p91 = por %p89, %p90
    %p92 = scmp.ne.s32.totalorder %s83, %s84
    %p93 = scmp.eq.s32.totalorder %s17, 0
    %p94 = por %p92, %p93
    %p95 = scmp.ne.s32.totalorder %s83, %s84
    %p96 = scmp.eq.s32.totalorder %s18, 1
    %p97 = por %p95, %p96
    %p99 = scmp.ne.s32.totalorder %s84, %s98
    %p100 = scmp.eq.s32.totalorder %s18, 0
    %p101 = por %p99, %p100
    %s102 = ssub.s32 %s19, %s31
    %p103 = scmp.eq.s32.totalorder %s102, 0
    %s105 = sadd.s32 %s104, 1
    %s106 = scalar_select %p103, %s104, %s105
    %p109 = pneg %p103
    %p110 = scmp.eq.s32.totalorder %s12, 1
    %p111 = por %p109, %p110
    %p112 = scmp.ne.s32.totalorder %s104, %s107
    %p113 = scmp.eq.s32.totalorder %s12, 0
    %p114 = por %p112, %p113
    %p115 = scmp.ne.s32.totalorder %s104, %s107
    %p116 = scmp.eq.s32.totalorder %s17, 1
    %p117 = por %p115, %p116
    %p118 = scmp.ne.s32.totalorder %s107, %s108
    %p119 = scmp.eq.s32.totalorder %s17, 0
    %p120 = por %p118, %p119
    %p121 = scmp.ne.s32.totalorder %s107, %s108
    %p122 = scmp.eq.s32.totalorder %s18, 1
    %p123 = por %p121, %p122
    %p125 = scmp.ne.s32.totalorder %s108, %s124
    %p126 = scmp.eq.s32.totalorder %s18, 0
    %p127 = por %p125, %p126
    %s128 = ssub.s32 %s20, %s27
    %s129 = ssub.s32 %s19, %s31
    %s130 = sor.u32 %s128, %s129
    %p131 = scmp.eq.s32.totalorder %s130, 0
    %s133 = sadd.s32 %s132, 1
    %s134 = scalar_select %p131, %s132, %s133
    %p137 = pneg %p131
    %p138 = scmp.eq.s32.totalorder %s12, 1
    %p139 = por %p137, %p138
    %p140 = scmp.ne.s32.totalorder %s132, %s135
    %p141 = scmp.eq.s32.totalorder %s12, 0
    %p142 = por %p140, %p141
    %p143 = scmp.ne.s32.totalorder %s132, %s135
    %p144 = scmp.eq.s32.totalorder %s17, 1
    %p145 = por %p143, %p144
    %p146 = scmp.ne.s32.totalorder %s135, %s136
    %p147 = scmp.eq.s32.totalorder %s17, 0
    %p148 = por %p146, %p147
    %p149 = scmp.ne.s32.totalorder %s135, %s136
    %p150 = scmp.eq.s32.totalorder %s18, 1
    %p151 = por %p149, %p150
    %p153 = scmp.ne.s32.totalorder %s136, %s152
    %p154 = scmp.eq.s32.totalorder %s18, 0
    %p155 = por %p153, %p154
    %s156 = ssub.s32 %s20, %s27
    %s157 = ssub.s32 %s19, %s31
    %s158 = sor.u32 %s156, %s157
    %p159 = scmp.eq.s32.totalorder %s158, 0
    %s161 = sadd.s32 %s160, 1
    %s162 = scalar_select %p159, %s160, %s161
    %p165 = pneg %p159
    %p166 = scmp.eq.s32.totalorder %s12, 1
    %p167 = por %p165, %p166
    %p168 = scmp.ne.s32.totalorder %s160, %s163
    %p169 = scmp.eq.s32.totalorder %s12, 0
    %p170 = por %p168, %p169
    %p171 = scmp.ne.s32.totalorder %s160, %s163
    %p172 = scmp.eq.s32.totalorder %s17, 1
    %p173 = por %p171, %p172
    %p174 = scmp.ne.s32.totalorder %s163, %s164
    %p175 = scmp.eq.s32.totalorder %s17, 0
    %p176 = por %p174, %p175
    %p177 = scmp.ne.s32.totalorder %s163, %s164
    %p178 = scmp.eq.s32.totalorder %s18, 1
    %p179 = por %p177, %p178
    %p181 = scmp.ne.s32.totalorder %s164, %s180
    %p182 = scmp.eq.s32.totalorder %s18, 0
    %p183 = por %p181, %p182
    %p184 = scmp.le.s32.totalorder 1, %s12
    %p185 = scmp.lt.s32.totalorder %s12, 3
    %p186 = pnand %p184, %p185
    %p187 = pneg %p186
    // Predicated region
    $region9: #{_lambda_.3} parent=5 // pred_check
      _
    $region10: #{_lambda_.3} parent=5 // pred_check_branch
      %189 = sbr.rel (%p186) target = $region12
    $region11: #{_lambda_.3} parent=5 // pred_region
      %s190 = ssub.s32 %s12, 1
      // Predicated region
      $region13: #{_lambda_.3} parent=11 // pred_check
        %p191 = pneg %p73
      $region14: #{_lambda_.3} parent=11 // pred_check_branch
        %193 = sbr.rel (%p191) target = $region16
      $region15: #{_lambda_.3} parent=11 // pred_region
        _
      $region16: #{_lambda_.3} parent=11 // pred_fallthru
        _
      // Predicated region
      $region17: #{_lambda_.3} parent=11 // pred_check
        %p194 = pneg %p94
      $region18: #{_lambda_.3} parent=11 // pred_check_branch
        %196 = sbr.rel (%p194) target = $region20
      $region19: #{_lambda_.3} parent=11 // pred_region
        _
      $region20: #{_lambda_.3} parent=11 // pred_fallthru
        _
      // Predicated region
      $region21: #{_lambda_.3} parent=11 // pred_check
        %p197 = pneg %p120
      $region22: #{_lambda_.3} parent=11 // pred_check_branch
        %199 = sbr.rel (%p197) target = $region24
      $region23: #{_lambda_.3} parent=11 // pred_region
        %s200 = smul.u32 2, %s21
        %p201 = scmp.lt.s32.totalorder %s200, 1
        %s202 = scalar_select %p201, %s200, 1
        %s203 = smul.addr %s202, 2
        %s204 = scalar_lea.vmem %s3, %s203
        %s205 = smul.u32 2, %s21
      $region24: #{_lambda_.3} parent=11 // pred_fallthru
        _
    $region12: #{_lambda_.3} parent=5 // pred_fallthru
      _
    %p206 = scmp.lt.s32.totalorder %s12, 2
    // Predicated region
    $region25: #{_lambda_.3} parent=5 // pred_check
      %p207 = pneg %p206
    $region26: #{_lambda_.3} parent=5 // pred_check_branch
      %209 = sbr.rel (%p207) target = $region28
    $region27: #{_lambda_.3} parent=5 // pred_region
      // Predicated region
      $region29: #{_lambda_.3} parent=27 // pred_check
        %p210 = pneg %p46
      $region30: #{_lambda_.3} parent=27 // pred_check_branch
        %212 = sbr.rel (%p210) target = $region32
      $region31: #{_lambda_.3} parent=27 // pred_region
        %s213 = smul.u32 2, %s19
        %p214 = scmp.lt.s32.totalorder %s20, 1
        %s215 = scalar_select %p214, %s20, 1
        %p216 = scmp.lt.s32.totalorder %s213, 1
        %s217 = scalar_select %p216, %s213, 1
        %s218 = smul.addr %s215, 2
        %s219 = sadd.s32 %s217, %s218
        %s220 = smul.addr %s219, 8
        %s221 = scalar_lea.vmem %s0, %s220
        %s222 = smul.u32 2, %s19
      $region32: #{_lambda_.3} parent=27 // pred_fallthru
        _
    $region28: #{_lambda_.3} parent=5 // pred_fallthru
      _
    %p223 = scmp.le.s32.totalorder 1, %s12
    %p224 = scmp.lt.s32.totalorder %s12, 3
    %p225 = pnand %p223, %p224
    %p226 = pneg %p225
    // Predicated region
    $region33: #{_lambda_.3} parent=5 // pred_check
      _
    $region34: #{_lambda_.3} parent=5 // pred_check_branch
      %228 = sbr.rel (%p225) target = $region36
    $region35: #{_lambda_.3} parent=5 // pred_region
      %s229 = ssub.s32 %s12, 1
      %s230 = smul.u32 2, %s21
      %p231 = scmp.lt.s32.totalorder %s22, 1
      %s232 = scalar_select %p231, %s22, 1
      %p233 = scmp.lt.s32.totalorder %s230, 1
      %s234 = scalar_select %p233, %s230, 1
      %s235 = smul.addr %s232, 2
      %s236 = sadd.s32 %s234, %s235
      %s237 = smul.addr %s236, 8
      %s238 = scalar_lea.vmem %s0, %s237
      %p239 = pneg %p52
      %p240 = pneg %p49
      %p241 = pneg %p73
      %p242 = pneg %p70
      %p243 = pneg %p94
      %p244 = pneg %p91
      %s245 = smul.u32 2, %s21
      %p246 = scmp.lt.s32.totalorder %s245, 1
      %s247 = scalar_select %p246, %s245, 1
      %s248 = smul.addr %s247, 2
      %s249 = scalar_lea.vmem %s3, %s248
      %p250 = pneg %p120
      %p251 = pneg %p117
      %p252 = pneg %p148
      %p253 = pneg %p145
      %s254 = smul.u32 2, %s21
      %p255 = scmp.lt.s32.totalorder %s22, 1
      %s256 = scalar_select %p255, %s22, 1
      %p257 = scmp.lt.s32.totalorder %s254, 1
      %s258 = scalar_select %p257, %s254, 1
      %s259 = smul.addr %s256, 6
      %s260 = sadd.s32 %s258, %s259
      %s261 = smul.addr %s260, 8
      %s262 = scalar_lea.vmem %s4, %s261
      %p263 = pneg %p176
      %p264 = pneg %p173
      %s265 = smul.u32 2, %s21
      %p266 = scmp.lt.s32.totalorder %s22, 1
      %s267 = scalar_select %p266, %s22, 1
      %p268 = scmp.lt.s32.totalorder %s265, 1
      %s269 = scalar_select %p268, %s265, 1
      %s270 = smul.addr %s267, 6
      %s271 = sadd.s32 %s269, %s270
      %s272 = smul.addr %s271, 8
      %s273 = scalar_lea.vmem %s5, %s272
      %s274 = smul.u32 2, %s21
      %p275 = scmp.lt.s32.totalorder %s22, 1
      %s276 = scalar_select %p275, %s22, 1
      %p277 = scmp.lt.s32.totalorder %s274, 1
      %s278 = scalar_select %p277, %s274, 1
      %s279 = smul.addr %s276, 2
      %s280 = sadd.s32 %s278, %s279
      %s281 = smul.addr %s280, 8
      %s282 = scalar_lea.vmem %s0, %s281
      %s283 = smul.u32 2, %s21
      %s284 = smul.u32 2, %s21
      %p285 = scmp.lt.s32.totalorder %s284, 1
      %s286 = scalar_select %p285, %s284, 1
      %s287 = smul.addr %s286, 2
      %s288 = scalar_lea.vmem %s3, %s287
      %s289 = smul.u32 2, %s21
      %s290 = smul.u32 2, %s21
      %p291 = scmp.lt.s32.totalorder %s22, 1
      %s292 = scalar_select %p291, %s22, 1
      %p293 = scmp.lt.s32.totalorder %s290, 1
      %s294 = scalar_select %p293, %s290, 1
      %s295 = smul.addr %s292, 6
      %s296 = sadd.s32 %s294, %s295
      %s297 = smul.addr %s296, 8
      %s298 = scalar_lea.vmem %s4, %s297
      %s299 = smul.u32 2, %s21
      %s300 = smul.u32 2, %s21
      %p301 = scmp.lt.s32.totalorder %s22, 1
      %s302 = scalar_select %p301, %s22, 1
      %p303 = scmp.lt.s32.totalorder %s300, 1
      %s304 = scalar_select %p303, %s300, 1
      %s305 = smul.addr %s302, 6
      %s306 = sadd.s32 %s304, %s305
      %s307 = smul.addr %s306, 8
      %s308 = scalar_lea.vmem %s5, %s307
      %s309 = smul.u32 2, %s21
      %v311 = vld [vmem:[%s282] sm:$0xff]
      %v312 = vld [vmem:[%s282 + $0x8] sm:$0xff]
      %v313 = vpack.c.bf16 %v311, %v311
      %v314 = vpack.c.bf16 %v312, %v312
      %v315 = vld [vmem:[%s1] sm:$0xf]
      %v316 = vld [vmem:[%s1 + $0x4] sm:$0xf]
      %v317 = vld [vmem:[%s1 + $0x8] sm:$0xf]
      %v318 = vld [vmem:[%s2] sm:$0xff]
      %v319 = vld [vmem:[%s2 + $0x8] sm:$0xff]
      %v320 = vld [vmem:[%s2 + $0x10] sm:$0xff]
      %322 = vset.pattern.permute.xlu0 0
      %323 = vperm.xlu0 %322, %v318
      %v324 = vpop.permute.xlu0 %323
      %327 = vset.pattern.permute.xlu0 0
      %328 = vperm.xlu0 %327, %v319
      %v329 = vpop.permute.xlu0 %328
      %332 = vset.pattern.permute.xlu0 0
      %333 = vperm.xlu0 %332, %v320
      %v334 = vpop.permute.xlu0 %333
      %v339 = vunpack.c.l.b16 %v315
      %v340 = vunpack.c.l.b16 %v316
      %v341 = vunpack.c.l.b16 %v317
      %v342 = vpack.c.b16 %v340, %v339
      %v343 = vpack.c.b16 %v341, %v341
      %vm344 = vcmask 64512
      %v346 = vsel %vm344, %v342, 0
      %v349 = vsel %vm344, %v343, 0
      %vm351 = vcmask 1043456
      %v353 = vsel %vm351, %v313, 0
      %v356 = vsel %vm351, %v314, 0
      %358 = vmatpush.bf16.msra.mxu0 0
      %359 = vmatpush.bf16.msra.mxu0 0
      %360 = vmatpush.bf16.msra.mxu0 0
      %361 = vmatpush.bf16.msra.mxu0 0
      %362 = vmatpush.bf16.msra.mxu0 0
      %363 = vmatpush.bf16.msra.mxu0 0
      %364 = vmatpush.bf16.msra.mxu0 0
      %365 = vmatpush.bf16.msra.mxu0 %v353
      %366 = vmatmul.bf16.gmra.mxu0 %v346
      %v367 = vpop.f32.mrf.mxu0
      %v368 = vadd.f32 %v324, %v367
      %v369 = vpop.f32.mrf.mxu0
      %v370 = vadd.f32 %v329, %v369
      %371 = vmatmul.bf16.gmra.mxu0 %v349
      %v372 = vpop.f32.mrf.mxu0
      %v373 = vadd.f32 %v334, %v372
      %v374 = vpop.f32.mrf.mxu0
      %375 = vdwg.mxu0
      %376 = vmatpush.bf16.msra.mxu0 0
      %377 = vmatpush.bf16.msra.mxu0 0
      %378 = vmatpush.bf16.msra.mxu0 0
      %379 = vmatpush.bf16.msra.mxu0 0
      %380 = vmatpush.bf16.msra.mxu0 0
      %381 = vmatpush.bf16.msra.mxu0 0
      %382 = vmatpush.bf16.msra.mxu0 0
      %383 = vmatpush.bf16.msra.mxu0 %v356
      %384 = vmatmul.bf16.gmra.mxu0 %v346
      %v385 = vpop.f32.mrf.mxu0
      %v386 = vadd.f32 %v324, %v385
      %v387 = vpop.f32.mrf.mxu0
      %v388 = vadd.f32 %v329, %v387
      %389 = vmatmul.bf16.gmra.mxu0 %v349
      %v390 = vpop.f32.mrf.mxu0
      %v391 = vadd.f32 %v334, %v390
      %v392 = vpop.f32.mrf.mxu0
      %393 = vdwg.mxu0
      %394 = vst [vmem:[%s298] sm:$0xff] %v368
      %395 = vst [vmem:[%s298 + $0x8] sm:$0xff] %v386
      %396 = vst [vmem:[%s298 + $0x10] sm:$0xff] %v370
      %397 = vst [vmem:[%s298 + $0x18] sm:$0xff] %v388
      %398 = vst [vmem:[%s298 + $0x20] sm:$0xff] %v373
      %399 = vst [vmem:[%s298 + $0x28] sm:$0xff] %v391
      %v400 = vxor.u32 %v368, 2147483648
      %v401 = vxor.u32 %v386, 2147483648
      %v402 = vxor.u32 %v370, 2147483648
      %v403 = vxor.u32 %v388, 2147483648
      %v404 = vxor.u32 %v373, 2147483648
      %v405 = vxor.u32 %v391, 2147483648
      %v406 = vmul.f32 %v400, 1.442695
      %v407 = vpow.pop %v406
      %v408 = vmul.f32 %v401, 1.442695
      %v409 = vpow.pop %v408
      %v410 = vmul.f32 %v402, 1.442695
      %v411 = vpow.pop %v410
      %v412 = vmul.f32 %v403, 1.442695
      %v413 = vpow.pop %v412
      %v414 = vmul.f32 %v404, 1.442695
      %v415 = vpow.pop %v414
      %v416 = vmul.f32 %v405, 1.442695
      %v417 = vpow.pop %v416
      %v418 = vadd.f32 %v407, 1.0
      %v419 = vadd.f32 %v409, 1.0
      %v420 = vadd.f32 %v411, 1.0
      %v421 = vadd.f32 %v413, 1.0
      %v422 = vadd.f32 %v415, 1.0
      %v423 = vadd.f32 %v417, 1.0
      %v424 = vrcp.pop %v418
      %v425 = vmul.f32 %v418, %v424
      %v426 = vsub.f32 1.0, %v425
      %v427 = vmul.f32 %v424, %v426
      %v428 = vadd.f32 %v424, %v427
      %vm429 = vweird.f32 %v418
      %vm430 = vweird.f32 %v424
      %vm431 = vmor %vm429, %vm430
      %v432 = vsel %vm431, %v424, %v428
      %v433 = vand.u32 2147483647, %v418
      %vm434 = vcmp.eq.f32.partialorder %v433, 8.507059e+37
      %v435 = vand.u32 %v418, 2147483648
      %v436 = vor.u32 1.1754944e-38, %v435
      %v437 = vsel %vm434, %v436, %v432
      %v438 = vmul.f32 1.0, %v437
      %v439 = vrcp.pop %v419
      %v440 = vmul.f32 %v419, %v439
      %v441 = vsub.f32 1.0, %v440
      %v442 = vmul.f32 %v439, %v441
      %v443 = vadd.f32 %v439, %v442
      %vm444 = vweird.f32 %v419
      %vm445 = vweird.f32 %v439
      %vm446 = vmor %vm444, %vm445
      %v447 = vsel %vm446, %v439, %v443
      %v448 = vand.u32 2147483647, %v419
      %vm449 = vcmp.eq.f32.partialorder %v448, 8.507059e+37
      %v450 = vand.u32 %v419, 2147483648
      %v451 = vor.u32 1.1754944e-38, %v450
      %v452 = vsel %vm449, %v451, %v447
      %v453 = vmul.f32 1.0, %v452
      %v454 = vrcp.pop %v420
      %v455 = vmul.f32 %v420, %v454
      %v456 = vsub.f32 1.0, %v455
      %v457 = vmul.f32 %v454, %v456
      %v458 = vadd.f32 %v454, %v457
      %vm459 = vweird.f32 %v420
      %vm460 = vweird.f32 %v454
      %vm461 = vmor %vm459, %vm460
      %v462 = vsel %vm461, %v454, %v458
      %v463 = vand.u32 2147483647, %v420
      %vm464 = vcmp.eq.f32.partialorder %v463, 8.507059e+37
      %v465 = vand.u32 %v420, 2147483648
      %v466 = vor.u32 1.1754944e-38, %v465
      %v467 = vsel %vm464, %v466, %v462
      %v468 = vmul.f32 1.0, %v467
      %v469 = vrcp.pop %v421
      %v470 = vmul.f32 %v421, %v469
      %v471 = vsub.f32 1.0, %v470
      %v472 = vmul.f32 %v469, %v471
      %v473 = vadd.f32 %v469, %v472
      %vm474 = vweird.f32 %v421
      %vm475 = vweird.f32 %v469
      %vm476 = vmor %vm474, %vm475
      %v477 = vsel %vm476, %v469, %v473
      %v478 = vand.u32 2147483647, %v421
      %vm479 = vcmp.eq.f32.partialorder %v478, 8.507059e+37
      %v480 = vand.u32 %v421, 2147483648
      %v481 = vor.u32 1.1754944e-38, %v480
      %v482 = vsel %vm479, %v481, %v477
      %v483 = vmul.f32 1.0, %v482
      %v484 = vrcp.pop %v422
      %v485 = vmul.f32 %v422, %v484
      %v486 = vsub.f32 1.0, %v485
      %v487 = vmul.f32 %v484, %v486
      %v488 = vadd.f32 %v484, %v487
      %vm489 = vweird.f32 %v422
      %vm490 = vweird.f32 %v484
      %vm491 = vmor %vm489, %vm490
      %v492 = vsel %vm491, %v484, %v488
      %v493 = vand.u32 2147483647, %v422
      %vm494 = vcmp.eq.f32.partialorder %v493, 8.507059e+37
      %v495 = vand.u32 %v422, 2147483648
      %v496 = vor.u32 1.1754944e-38, %v495
      %v497 = vsel %vm494, %v496, %v492
      %v498 = vmul.f32 1.0, %v497
      %v499 = vrcp.pop %v423
      %v500 = vmul.f32 %v423, %v499
      %v501 = vsub.f32 1.0, %v500
      %v502 = vmul.f32 %v499, %v501
      %v503 = vadd.f32 %v499, %v502
      %vm504 = vweird.f32 %v423
      %vm505 = vweird.f32 %v499
      %vm506 = vmor %vm504, %vm505
      %v507 = vsel %vm506, %v499, %v503
      %v508 = vand.u32 2147483647, %v423
      %vm509 = vcmp.eq.f32.partialorder %v508, 8.507059e+37
      %v510 = vand.u32 %v423, 2147483648
      %v511 = vor.u32 1.1754944e-38, %v510
      %v512 = vsel %vm509, %v511, %v507
      %v513 = vmul.f32 1.0, %v512
      %v514 = vld [vmem:[%s288] ss:$2 sm:$0x3]
      %515 = vset.pattern.permute.xlu0 3
      %516 = vperm.xlu0 %515, %v318
      %v517 = vpop.permute.xlu0 %516
      %519 = vset.pattern.permute.xlu0 3
      %520 = vperm.xlu0 %519, %v319
      %v521 = vpop.permute.xlu0 %520
      %523 = vset.pattern.permute.xlu0 3
      %524 = vperm.xlu0 %523, %v320
      %v525 = vpop.permute.xlu0 %524
      %v528 = vperm.slane %v514, 0
      %v529 = vperm.slane %v514, 1
      %v532 = vmul.f32 %v517, %v528
      %v533 = vmul.f32 %v517, %v529
      %v534 = vmul.f32 %v521, %v528
      %v535 = vmul.f32 %v521, %v529
      %v536 = vmul.f32 %v525, %v528
      %v537 = vmul.f32 %v525, %v529
      %s538 = scalar_lea.vmem %s288, 1
      %v539 = vld [vmem:[%s538] ss:$2 sm:$0x3]
      %540 = vset.pattern.permute.xlu0 4
      %541 = vperm.xlu0 %540, %v318
      %v542 = vpop.permute.xlu0 %541
      %544 = vset.pattern.permute.xlu0 4
      %545 = vperm.xlu0 %544, %v319
      %v546 = vpop.permute.xlu0 %545
      %548 = vset.pattern.permute.xlu0 4
      %549 = vperm.xlu0 %548, %v320
      %v550 = vpop.permute.xlu0 %549
      %v553 = vperm.slane %v539, 0
      %v554 = vperm.slane %v539, 1
      %v557 = vmul.f32 %v542, %v553
      %v558 = vmul.f32 %v542, %v554
      %v559 = vmul.f32 %v546, %v553
      %v560 = vmul.f32 %v546, %v554
      %v561 = vmul.f32 %v550, %v553
      %v562 = vmul.f32 %v550, %v554
      %v563 = vadd.f32 %v532, %v557
      %v564 = vadd.f32 %v533, %v558
      %v565 = vadd.f32 %v534, %v559
      %v566 = vadd.f32 %v535, %v560
      %v567 = vadd.f32 %v536, %v561
      %v568 = vadd.f32 %v537, %v562
      %569 = vset.pattern.permute.xlu0 1
      %570 = vperm.xlu0 %569, %v318
      %v571 = vpop.permute.xlu0 %570
      %573 = vset.pattern.permute.xlu0 1
      %574 = vperm.xlu0 %573, %v319
      %v575 = vpop.permute.xlu0 %574
      %577 = vset.pattern.permute.xlu0 1
      %578 = vperm.xlu0 %577, %v320
      %v579 = vpop.permute.xlu0 %578
      %v581 = vmul.f32 %v571, %v438
      %v582 = vmul.f32 %v571, %v453
      %v583 = vmul.f32 %v575, %v468
      %v584 = vmul.f32 %v575, %v483
      %v585 = vmul.f32 %v579, %v498
      %v586 = vmul.f32 %v579, %v513
      %587 = vset.pattern.permute.xlu0 2
      %588 = vperm.xlu0 %587, %v318
      %v589 = vpop.permute.xlu0 %588
      %591 = vset.pattern.permute.xlu0 2
      %592 = vperm.xlu0 %591, %v319
      %v593 = vpop.permute.xlu0 %592
      %595 = vset.pattern.permute.xlu0 2
      %596 = vperm.xlu0 %595, %v320
      %v597 = vpop.permute.xlu0 %596
      %v599 = vadd.f32 %v581, %v589
      %v600 = vadd.f32 %v582, %v589
      %v601 = vadd.f32 %v583, %v593
      %v602 = vadd.f32 %v584, %v593
      %v603 = vadd.f32 %v585, %v597
      %v604 = vadd.f32 %v586, %v597
      %v605 = vmul.f32 %v599, %v438
      %v606 = vmul.f32 %v600, %v453
      %v607 = vmul.f32 %v601, %v468
      %v608 = vmul.f32 %v602, %v483
      %v609 = vmul.f32 %v603, %v498
      %v610 = vmul.f32 %v604, %v513
      %v611 = vadd.f32 %v605, %v563
      %v612 = vadd.f32 %v606, %v564
      %v613 = vadd.f32 %v607, %v565
      %v614 = vadd.f32 %v608, %v566
      %v615 = vadd.f32 %v609, %v567
      %v616 = vadd.f32 %v610, %v568
      %617 = vst [vmem:[%s308] sm:$0xff] %v611
      %618 = vst [vmem:[%s308 + $0x8] sm:$0xff] %v612
      %619 = vst [vmem:[%s308 + $0x10] sm:$0xff] %v613
      %620 = vst [vmem:[%s308 + $0x18] sm:$0xff] %v614
      %621 = vst [vmem:[%s308 + $0x20] sm:$0xff] %v615
      %622 = vst [vmem:[%s308 + $0x28] sm:$0xff] %v616
      %s623 = smul.u32 2, %s21
      %p624 = scmp.lt.s32.totalorder %s22, 1
      %s625 = scalar_select %p624, %s22, 1
      %p626 = scmp.lt.s32.totalorder %s623, 1
      %s627 = scalar_select %p626, %s623, 1
      %s628 = smul.addr %s625, 6
      %s629 = sadd.s32 %s627, %s628
      %s630 = smul.addr %s629, 8
      %s631 = scalar_lea.vmem %s4, %s630
      %s632 = smul.u32 2, %s21
      %p633 = scmp.lt.s32.totalorder %s22, 1
      %s634 = scalar_select %p633, %s22, 1
      %p635 = scmp.lt.s32.totalorder %s632, 1
      %s636 = scalar_select %p635, %s632, 1
      %s637 = smul.addr %s634, 6
      %s638 = sadd.s32 %s636, %s637
      %s639 = smul.addr %s638, 8
      %s640 = scalar_lea.vmem %s5, %s639
      // Predicated region
      $region37: #{_lambda_.3} parent=35 // pred_check
        %p641 = pneg %p145
      $region38: #{_lambda_.3} parent=35 // pred_check_branch
        %643 = sbr.rel (%p641) target = $region40
      $region39: #{_lambda_.3} parent=35 // pred_region
        %s644 = smul.u32 2, %s21
      $region40: #{_lambda_.3} parent=35 // pred_fallthru
        _
      // Predicated region
      $region41: #{_lambda_.3} parent=35 // pred_check
        %p645 = pneg %p173
      $region42: #{_lambda_.3} parent=35 // pred_check_branch
        %647 = sbr.rel (%p645) target = $region44
      $region43: #{_lambda_.3} parent=35 // pred_region
        %s648 = smul.u32 2, %s21
      $region44: #{_lambda_.3} parent=35 // pred_fallthru
        _
    $region36: #{_lambda_.3} parent=5 // pred_fallthru
      _
    %p649 = scmp.le.s32.totalorder 2, %s12
    // Predicated region
    $region45: #{_lambda_.3} parent=5 // pred_check
      %p650 = pneg %p649
    $region46: #{_lambda_.3} parent=5 // pred_check_branch
      %652 = sbr.rel (%p650) target = $region48
    $region47: #{_lambda_.3} parent=5 // pred_region
      %s653 = ssub.s32 %s12, 2
      // Predicated region
      $region49: #{_lambda_.3} parent=47 // pred_check
        %p654 = pneg %p151
      $region50: #{_lambda_.3} parent=47 // pred_check_branch
        %656 = sbr.rel (%p654) target = $region52
      $region51: #{_lambda_.3} parent=47 // pred_region
        %s657 = smul.u32 2, %s23
        %p658 = scmp.lt.s32.totalorder %s24, 1
        %s659 = scalar_select %p658, %s24, 1
        %p660 = scmp.lt.s32.totalorder %s657, 1
        %s661 = scalar_select %p660, %s657, 1
        %s662 = smul.addr %s659, 6
        %s663 = sadd.s32 %s661, %s662
        %s664 = smul.addr %s663, 8
        %s665 = scalar_lea.vmem %s4, %s664
      $region52: #{_lambda_.3} parent=47 // pred_fallthru
        _
      // Predicated region
      $region53: #{_lambda_.3} parent=47 // pred_check
        %p666 = pneg %p179
      $region54: #{_lambda_.3} parent=47 // pred_check_branch
        %668 = sbr.rel (%p666) target = $region56
      $region55: #{_lambda_.3} parent=47 // pred_region
        %s669 = smul.u32 2, %s23
        %p670 = scmp.lt.s32.totalorder %s24, 1
        %s671 = scalar_select %p670, %s24, 1
        %p672 = scmp.lt.s32.totalorder %s669, 1
        %s673 = scalar_select %p672, %s669, 1
        %s674 = smul.addr %s671, 6
        %s675 = sadd.s32 %s673, %s674
        %s676 = smul.addr %s675, 8
        %s677 = scalar_lea.vmem %s5, %s676
      $region56: #{_lambda_.3} parent=47 // pred_fallthru
        _
    $region48: #{_lambda_.3} parent=5 // pred_fallthru
      _
  $region6: #{_lambda_.3} parent=0 // loop_footer
    %s16 = sadd.s32 1, %s12
  $region7: #{_lambda_.3} parent=0 // loop_footer_branch
    %11 = sbr.rel target = $region3
  $region8: #{_lambda_.3} parent=0 // loop_exit
    _

// kernel: _lambda_.4
$region0: #{_lambda_.4}
  #allocation0 [shape = 'u32[]', space=smem, size = 0x4, offset = 0x4, fixed_abs, tag = 'smem constant byte address 0x4 - core index']
  #allocation1 [shape = 'u32[72,128]{1,0:T(1,128)}', space=vmem, size = 0x9000, scoped, tag = 'internal scratch']
  %s0 = inlined_call_operand.vmem [shape: f32[2,16,64], index: 0, kind: input, shape index: {}]
  %s1 = inlined_call_operand.vmem [shape: bf16[24,16], index: 1, kind: input, shape index: {}]
  %s2 = inlined_call_operand.vmem [shape: f32[24,8], index: 2, kind: input, shape index: {}]
  %s3 = inlined_call_operand.vmem [shape: f32[2,64], index: 3, kind: input, shape index: {}]
  %s4 = inlined_call_operand.vmem [shape: f32[2,24,64], index: 4, kind: output, shape index: {0}]
  %s5 = inlined_call_operand.vmem [shape: f32[2,24,64], index: 5, kind: output, shape index: {1}]
  %6 = xla_tuple %s4, %s5
  %s7 = sld [smem:[#allocation0]]
  $region57: #{_lambda_.4} parent=0
    _
  %s9 = ssub.s32 1, %s7
  %s10 = scalar_select 0, %s9, %s7
  loop: start=0, step=1, limit=4
  $region2: #{_lambda_.4} parent=0 // loop_pre_header
    _
  $region3: #{_lambda_.4} parent=0 // loop_header
    %s12 = sphi 0, %s16
    %p13 = scmp.ge.s32.totalorder %s12, 4
    %s19 = sphi 0, %s31
    %s20 = sphi 0, %s27
    %s21 = sphi 0, %s19
    %s22 = sphi 0, %s20
    %s23 = sphi 0, %s21
    %s24 = sphi 0, %s22
    %s36 = sphi 0, %s38
    %s39 = sphi 0, %s36
    %s40 = sphi 0, %s39
    %s56 = sphi 0, %s40
    %s60 = sphi 0, %s60
    %s62 = sphi 0, %s60
    %s63 = sphi 0, %s62
    %s77 = sphi 0, %s63
    %s81 = sphi 0, %s81
    %s83 = sphi 0, %s81
    %s84 = sphi 0, %s83
    %s98 = sphi 0, %s84
    %s104 = sphi 0, %s106
    %s107 = sphi 0, %s104
    %s108 = sphi 0, %s107
    %s124 = sphi 0, %s108
    %s132 = sphi 0, %s134
    %s135 = sphi 0, %s132
    %s136 = sphi 0, %s135
    %s152 = sphi 0, %s136
    %s160 = sphi 0, %s162
    %s163 = sphi 0, %s160
    %s164 = sphi 0, %s163
    %s180 = sphi 0, %s164
  $region4: #{_lambda_.4} parent=0 // loop_header_branch
    %15 = sbr.rel (%p13) target = $region8
  $region5: #{_lambda_.4} parent=0 // loop_body
    %s17 = ssub.s32 %s12, 1
    %s18 = ssub.s32 %s12, 2
    %s25 = sadd.s32 1, %s20
    %p26 = scmp.ge.s32.totalorder %s25, 2
    %s27 = scalar_select %p26, 0, %s25
    %s28 = sadd.s32 1, %s19
    %s29 = scalar_select %p26, %s28, %s19
    %p30 = scmp.ge.s32.totalorder %s29, 1
    %s31 = scalar_select %p30, 0, %s29
    %s32 = ssub.s32 %s20, %s27
    %s33 = ssub.s32 %s19, %s31
    %s34 = sor.u32 %s32, %s33
    %p35 = scmp.eq.s32.totalorder %s34, 0
    %s37 = sadd.s32 %s36, 1
    %s38 = scalar_select %p35, %s36, %s37
    %p41 = pneg %p35
    %p42 = scmp.eq.s32.totalorder %s12, 1
    %p43 = por %p41, %p42
    %p44 = scmp.ne.s32.totalorder %s36, %s39
    %p45 = scmp.eq.s32.totalorder %s12, 0
    %p46 = por %p44, %p45
    %p47 = scmp.ne.s32.totalorder %s36, %s39
    %p48 = scmp.eq.s32.totalorder %s17, 1
    %p49 = por %p47, %p48
    %p50 = scmp.ne.s32.totalorder %s39, %s40
    %p51 = scmp.eq.s32.totalorder %s17, 0
    %p52 = por %p50, %p51
    %p53 = scmp.ne.s32.totalorder %s39, %s40
    %p54 = scmp.eq.s32.totalorder %s18, 1
    %p55 = por %p53, %p54
    %p57 = scmp.ne.s32.totalorder %s40, %s56
    %p58 = scmp.eq.s32.totalorder %s18, 0
    %p59 = por %p57, %p58
    %s61 = sadd.s32 %s60, 1
    %p64 = scmp.eq.s32.totalorder %s12, 1
    %p65 = scmp.ne.s32.totalorder %s60, %s62
    %p66 = scmp.eq.s32.totalorder %s12, 0
    %p67 = por %p65, %p66
    %p68 = scmp.ne.s32.totalorder %s60, %s62
    %p69 = scmp.eq.s32.totalorder %s17, 1
    %p70 = por %p68, %p69
    %p71 = scmp.ne.s32.totalorder %s62, %s63
    %p72 = scmp.eq.s32.totalorder %s17, 0
    %p73 = por %p71, %p72
    %p74 = scmp.ne.s32.totalorder %s62, %s63
    %p75 = scmp.eq.s32.totalorder %s18, 1
    %p76 = por %p74, %p75
    %p78 = scmp.ne.s32.totalorder %s63, %s77
    %p79 = scmp.eq.s32.totalorder %s18, 0
    %p80 = por %p78, %p79
    %s82 = sadd.s32 %s81, 1
    %p85 = scmp.eq.s32.totalorder %s12, 1
    %p86 = scmp.ne.s32.totalorder %s81, %s83
    %p87 = scmp.eq.s32.totalorder %s12, 0
    %p88 = por %p86, %p87
    %p89 = scmp.ne.s32.totalorder %s81, %s83
    %p90 = scmp.eq.s32.totalorder %s17, 1
    %p91 = por %p89, %p90
    %p92 = scmp.ne.s32.totalorder %s83, %s84
    %p93 = scmp.eq.s32.totalorder %s17, 0
    %p94 = por %p92, %p93
    %p95 = scmp.ne.s32.totalorder %s83, %s84
    %p96 = scmp.eq.s32.totalorder %s18, 1
    %p97 = por %p95, %p96
    %p99 = scmp.ne.s32.totalorder %s84, %s98
    %p100 = scmp.eq.s32.totalorder %s18, 0
    %p101 = por %p99, %p100
    %s102 = ssub.s32 %s19, %s31
    %p103 = scmp.eq.s32.totalorder %s102, 0
    %s105 = sadd.s32 %s104, 1
    %s106 = scalar_select %p103, %s104, %s105
    %p109 = pneg %p103
    %p110 = scmp.eq.s32.totalorder %s12, 1
    %p111 = por %p109, %p110
    %p112 = scmp.ne.s32.totalorder %s104, %s107
    %p113 = scmp.eq.s32.totalorder %s12, 0
    %p114 = por %p112, %p113
    %p115 = scmp.ne.s32.totalorder %s104, %s107
    %p116 = scmp.eq.s32.totalorder %s17, 1
    %p117 = por %p115, %p116
    %p118 = scmp.ne.s32.totalorder %s107, %s108
    %p119 = scmp.eq.s32.totalorder %s17, 0
    %p120 = por %p118, %p119
    %p121 = scmp.ne.s32.totalorder %s107, %s108
    %p122 = scmp.eq.s32.totalorder %s18, 1
    %p123 = por %p121, %p122
    %p125 = scmp.ne.s32.totalorder %s108, %s124
    %p126 = scmp.eq.s32.totalorder %s18, 0
    %p127 = por %p125, %p126
    %s128 = ssub.s32 %s20, %s27
    %s129 = ssub.s32 %s19, %s31
    %s130 = sor.u32 %s128, %s129
    %p131 = scmp.eq.s32.totalorder %s130, 0
    %s133 = sadd.s32 %s132, 1
    %s134 = scalar_select %p131, %s132, %s133
    %p137 = pneg %p131
    %p138 = scmp.eq.s32.totalorder %s12, 1
    %p139 = por %p137, %p138
    %p140 = scmp.ne.s32.totalorder %s132, %s135
    %p141 = scmp.eq.s32.totalorder %s12, 0
    %p142 = por %p140, %p141
    %p143 = scmp.ne.s32.totalorder %s132, %s135
    %p144 = scmp.eq.s32.totalorder %s17, 1
    %p145 = por %p143, %p144
    %p146 = scmp.ne.s32.totalorder %s135, %s136
    %p147 = scmp.eq.s32.totalorder %s17, 0
    %p148 = por %p146, %p147
    %p149 = scmp.ne.s32.totalorder %s135, %s136
    %p150 = scmp.eq.s32.totalorder %s18, 1
    %p151 = por %p149, %p150
    %p153 = scmp.ne.s32.totalorder %s136, %s152
    %p154 = scmp.eq.s32.totalorder %s18, 0
    %p155 = por %p153, %p154
    %s156 = ssub.s32 %s20, %s27
    %s157 = ssub.s32 %s19, %s31
    %s158 = sor.u32 %s156, %s157
    %p159 = scmp.eq.s32.totalorder %s158, 0
    %s161 = sadd.s32 %s160, 1
    %s162 = scalar_select %p159, %s160, %s161
    %p165 = pneg %p159
    %p166 = scmp.eq.s32.totalorder %s12, 1
    %p167 = por %p165, %p166
    %p168 = scmp.ne.s32.totalorder %s160, %s163
    %p169 = scmp.eq.s32.totalorder %s12, 0
    %p170 = por %p168, %p169
    %p171 = scmp.ne.s32.totalorder %s160, %s163
    %p172 = scmp.eq.s32.totalorder %s17, 1
    %p173 = por %p171, %p172
    %p174 = scmp.ne.s32.totalorder %s163, %s164
    %p175 = scmp.eq.s32.totalorder %s17, 0
    %p176 = por %p174, %p175
    %p177 = scmp.ne.s32.totalorder %s163, %s164
    %p178 = scmp.eq.s32.totalorder %s18, 1
    %p179 = por %p177, %p178
    %p181 = scmp.ne.s32.totalorder %s164, %s180
    %p182 = scmp.eq.s32.totalorder %s18, 0
    %p183 = por %p181, %p182
    %p184 = scmp.le.s32.totalorder 1, %s12
    %p185 = scmp.lt.s32.totalorder %s12, 3
    %p186 = pnand %p184, %p185
    %p187 = pneg %p186
    // Predicated region
    $region9: #{_lambda_.4} parent=5 // pred_check
      _
    $region10: #{_lambda_.4} parent=5 // pred_check_branch
      %189 = sbr.rel (%p186) target = $region12
    $region11: #{_lambda_.4} parent=5 // pred_region
      %s190 = ssub.s32 %s12, 1
      // Predicated region
      $region13: #{_lambda_.4} parent=11 // pred_check
        %p191 = pneg %p73
      $region14: #{_lambda_.4} parent=11 // pred_check_branch
        %193 = sbr.rel (%p191) target = $region16
      $region15: #{_lambda_.4} parent=11 // pred_region
        _
      $region16: #{_lambda_.4} parent=11 // pred_fallthru
        _
      // Predicated region
      $region17: #{_lambda_.4} parent=11 // pred_check
        %p194 = pneg %p94
      $region18: #{_lambda_.4} parent=11 // pred_check_branch
        %196 = sbr.rel (%p194) target = $region20
      $region19: #{_lambda_.4} parent=11 // pred_region
        _
      $region20: #{_lambda_.4} parent=11 // pred_fallthru
        _
      // Predicated region
      $region21: #{_lambda_.4} parent=11 // pred_check
        %p197 = pneg %p120
      $region22: #{_lambda_.4} parent=11 // pred_check_branch
        %199 = sbr.rel (%p197) target = $region24
      $region23: #{_lambda_.4} parent=11 // pred_region
        %p200 = scmp.lt.s32.totalorder %s21, 0
        %s201 = scalar_select %p200, %s21, 0
        %s202 = smul.addr %s201, 2
        %s203 = scalar_lea.vmem %s3, %s202
      $region24: #{_lambda_.4} parent=11 // pred_fallthru
        _
    $region12: #{_lambda_.4} parent=5 // pred_fallthru
      _
    %p204 = scmp.lt.s32.totalorder %s12, 2
    // Predicated region
    $region25: #{_lambda_.4} parent=5 // pred_check
      %p205 = pneg %p204
    $region26: #{_lambda_.4} parent=5 // pred_check_branch
      %207 = sbr.rel (%p205) target = $region28
    $region27: #{_lambda_.4} parent=5 // pred_region
      // Predicated region
      $region29: #{_lambda_.4} parent=27 // pred_check
        %p208 = pneg %p46
      $region30: #{_lambda_.4} parent=27 // pred_check_branch
        %210 = sbr.rel (%p208) target = $region32
      $region31: #{_lambda_.4} parent=27 // pred_region
        %p211 = scmp.lt.s32.totalorder %s20, 1
        %s212 = scalar_select %p211, %s20, 1
        %p213 = scmp.lt.s32.totalorder %s19, 0
        %s214 = scalar_select %p213, %s19, 0
        %s215 = smul.addr %s212, 2
        %s216 = sadd.s32 %s214, %s215
        %s217 = smul.addr %s216, 8
        %s218 = scalar_lea.vmem %s0, %s217
      $region32: #{_lambda_.4} parent=27 // pred_fallthru
        _
    $region28: #{_lambda_.4} parent=5 // pred_fallthru
      _
    %p219 = scmp.le.s32.totalorder 1, %s12
    %p220 = scmp.lt.s32.totalorder %s12, 3
    %p221 = pnand %p219, %p220
    %p222 = pneg %p221
    // Predicated region
    $region33: #{_lambda_.4} parent=5 // pred_check
      _
    $region34: #{_lambda_.4} parent=5 // pred_check_branch
      %224 = sbr.rel (%p221) target = $region36
    $region35: #{_lambda_.4} parent=5 // pred_region
      %s225 = ssub.s32 %s12, 1
      %p226 = scmp.lt.s32.totalorder %s22, 1
      %s227 = scalar_select %p226, %s22, 1
      %p228 = scmp.lt.s32.totalorder %s21, 0
      %s229 = scalar_select %p228, %s21, 0
      %s230 = smul.addr %s227, 2
      %s231 = sadd.s32 %s229, %s230
      %s232 = smul.addr %s231, 8
      %s233 = scalar_lea.vmem %s0, %s232
      %p234 = pneg %p52
      %p235 = pneg %p49
      %p236 = pneg %p73
      %p237 = pneg %p70
      %p238 = pneg %p94
      %p239 = pneg %p91
      %p240 = scmp.lt.s32.totalorder %s21, 0
      %s241 = scalar_select %p240, %s21, 0
      %s242 = smul.addr %s241, 2
      %s243 = scalar_lea.vmem %s3, %s242
      %p244 = pneg %p120
      %p245 = pneg %p117
      %p246 = pneg %p148
      %p247 = pneg %p145
      %p248 = scmp.lt.s32.totalorder %s22, 1
      %s249 = scalar_select %p248, %s22, 1
      %p250 = scmp.lt.s32.totalorder %s21, 0
      %s251 = scalar_select %p250, %s21, 0
      %s252 = smul.addr %s249, 3
      %s253 = sadd.s32 %s251, %s252
      %s254 = smul.addr %s253, 8
      %s255 = scalar_lea.vmem %s4, %s254
      %p256 = pneg %p176
      %p257 = pneg %p173
      %p258 = scmp.lt.s32.totalorder %s22, 1
      %s259 = scalar_select %p258, %s22, 1
      %p260 = scmp.lt.s32.totalorder %s21, 0
      %s261 = scalar_select %p260, %s21, 0
      %s262 = smul.addr %s259, 3
      %s263 = sadd.s32 %s261, %s262
      %s264 = smul.addr %s263, 8
      %s265 = scalar_lea.vmem %s5, %s264
      %p266 = scmp.lt.s32.totalorder %s22, 1
      %s267 = scalar_select %p266, %s22, 1
      %p268 = scmp.lt.s32.totalorder %s21, 0
      %s269 = scalar_select %p268, %s21, 0
      %s270 = smul.addr %s267, 2
      %s271 = sadd.s32 %s269, %s270
      %s272 = smul.addr %s271, 8
      %s273 = scalar_lea.vmem %s0, %s272
      %p274 = scmp.lt.s32.totalorder %s21, 0
      %s275 = scalar_select %p274, %s21, 0
      %s276 = smul.addr %s275, 2
      %s277 = scalar_lea.vmem %s3, %s276
      %p278 = scmp.lt.s32.totalorder %s22, 1
      %s279 = scalar_select %p278, %s22, 1
      %p280 = scmp.lt.s32.totalorder %s21, 0
      %s281 = scalar_select %p280, %s21, 0
      %s282 = smul.addr %s279, 3
      %s283 = sadd.s32 %s281, %s282
      %s284 = smul.addr %s283, 8
      %s285 = scalar_lea.vmem %s4, %s284
      %p286 = scmp.lt.s32.totalorder %s22, 1
      %s287 = scalar_select %p286, %s22, 1
      %p288 = scmp.lt.s32.totalorder %s21, 0
      %s289 = scalar_select %p288, %s21, 0
      %s290 = smul.addr %s287, 3
      %s291 = sadd.s32 %s289, %s290
      %s292 = smul.addr %s291, 8
      %s293 = scalar_lea.vmem %s5, %s292
      %v295 = vld [vmem:[%s273] sm:$0xff]
      %v296 = vld [vmem:[%s273 + $0x8] sm:$0xff]
      %v297 = vpack.c.bf16 %v296, %v295
      %v298 = vld [vmem:[%s1] sm:$0xf]
      %v299 = vld [vmem:[%s1 + $0x4] sm:$0xf]
      %v300 = vld [vmem:[%s1 + $0x8] sm:$0xf]
      %v301 = vld [vmem:[%s2] sm:$0xff]
      %v302 = vld [vmem:[%s2 + $0x8] sm:$0xff]
      %v303 = vld [vmem:[%s2 + $0x10] sm:$0xff]
      %305 = vset.pattern.permute.xlu0 0
      %306 = vperm.xlu0 %305, %v301
      %v307 = vpop.permute.xlu0 %306
      %310 = vset.pattern.permute.xlu0 0
      %311 = vperm.xlu0 %310, %v302
      %v312 = vpop.permute.xlu0 %311
      %315 = vset.pattern.permute.xlu0 0
      %316 = vperm.xlu0 %315, %v303
      %v317 = vpop.permute.xlu0 %316
      %v322 = vunpack.c.l.b16 %v298
      %v323 = vunpack.c.l.b16 %v299
      %v324 = vunpack.c.l.b16 %v300
      %v325 = vpack.c.b16 %v323, %v322
      %v326 = vpack.c.b16 %v324, %v324
      %vm327 = vcmask 130048
      %v329 = vsel %vm327, %v325, 0
      %v332 = vsel %vm327, %v326, 0
      %334 = vmatpush.bf16.msra.mxu0 0
      %335 = vmatpush.bf16.msra.mxu0 0
      %336 = vmatpush.bf16.msra.mxu0 0
      %337 = vmatpush.bf16.msra.mxu0 0
      %338 = vmatpush.bf16.msra.mxu0 0
      %339 = vmatpush.bf16.msra.mxu0 0
      %340 = vmatpush.bf16.msra.mxu0 0
      %341 = vmatpush.bf16.msra.mxu0 %v297
      %342 = vmatmul.bf16.gmra.mxu0 %v329
      %v343 = vpop.f32.mrf.mxu0
      %v344 = vadd.f32 %v307, %v343
      %v345 = vpop.f32.mrf.mxu0
      %v346 = vadd.f32 %v312, %v345
      %347 = vmatmul.bf16.gmra.mxu0 %v332
      %v348 = vpop.f32.mrf.mxu0
      %v349 = vadd.f32 %v317, %v348
      %v350 = vpop.f32.mrf.mxu0
      %351 = vdwg.mxu0
      %vm352 = vcmask 523264
      %353 = vst.msk [vmem:[%s285] sm:$0xff] %vm352, %v344
      %354 = vst.msk [vmem:[%s285 + $0x8] sm:$0xff] %vm352, %v346
      %355 = vst.msk [vmem:[%s285 + $0x10] sm:$0xff] %vm352, %v349
      %v356 = vxor.u32 %v344, 2147483648
      %v357 = vxor.u32 %v346, 2147483648
      %v358 = vxor.u32 %v349, 2147483648
      %v359 = vmul.f32 %v356, 1.442695
      %v360 = vpow.pop %v359
      %v361 = vmul.f32 %v357, 1.442695
      %v362 = vpow.pop %v361
      %v363 = vmul.f32 %v358, 1.442695
      %v364 = vpow.pop %v363
      %v365 = vadd.f32 %v360, 1.0
      %v366 = vadd.f32 %v362, 1.0
      %v367 = vadd.f32 %v364, 1.0
      %v368 = vrcp.pop %v365
      %v369 = vmul.f32 %v365, %v368
      %v370 = vsub.f32 1.0, %v369
      %v371 = vmul.f32 %v368, %v370
      %v372 = vadd.f32 %v368, %v371
      %vm373 = vweird.f32 %v365
      %vm374 = vweird.f32 %v368
      %vm375 = vmor %vm373, %vm374
      %v376 = vsel %vm375, %v368, %v372
      %v377 = vand.u32 2147483647, %v365
      %vm378 = vcmp.eq.f32.partialorder %v377, 8.507059e+37
      %v379 = vand.u32 %v365, 2147483648
      %v380 = vor.u32 1.1754944e-38, %v379
      %v381 = vsel %vm378, %v380, %v376
      %v382 = vmul.f32 1.0, %v381
      %v383 = vrcp.pop %v366
      %v384 = vmul.f32 %v366, %v383
      %v385 = vsub.f32 1.0, %v384
      %v386 = vmul.f32 %v383, %v385
      %v387 = vadd.f32 %v383, %v386
      %vm388 = vweird.f32 %v366
      %vm389 = vweird.f32 %v383
      %vm390 = vmor %vm388, %vm389
      %v391 = vsel %vm390, %v383, %v387
      %v392 = vand.u32 2147483647, %v366
      %vm393 = vcmp.eq.f32.partialorder %v392, 8.507059e+37
      %v394 = vand.u32 %v366, 2147483648
      %v395 = vor.u32 1.1754944e-38, %v394
      %v396 = vsel %vm393, %v395, %v391
      %v397 = vmul.f32 1.0, %v396
      %v398 = vrcp.pop %v367
      %v399 = vmul.f32 %v367, %v398
      %v400 = vsub.f32 1.0, %v399
      %v401 = vmul.f32 %v398, %v400
      %v402 = vadd.f32 %v398, %v401
      %vm403 = vweird.f32 %v367
      %vm404 = vweird.f32 %v398
      %vm405 = vmor %vm403, %vm404
      %v406 = vsel %vm405, %v398, %v402
      %v407 = vand.u32 2147483647, %v367
      %vm408 = vcmp.eq.f32.partialorder %v407, 8.507059e+37
      %v409 = vand.u32 %v367, 2147483648
      %v410 = vor.u32 1.1754944e-38, %v409
      %v411 = vsel %vm408, %v410, %v406
      %v412 = vmul.f32 1.0, %v411
      %v413 = vld [vmem:[%s277] sm:$0x1]
      %414 = vset.pattern.permute.xlu0 3
      %415 = vperm.xlu0 %414, %v301
      %v416 = vpop.permute.xlu0 %415
      %418 = vset.pattern.permute.xlu0 3
      %419 = vperm.xlu0 %418, %v302
      %v420 = vpop.permute.xlu0 %419
      %422 = vset.pattern.permute.xlu0 3
      %423 = vperm.xlu0 %422, %v303
      %v424 = vpop.permute.xlu0 %423
      %v426 = vperm.slane %v413, 0
      %v427 = vmul.f32 %v416, %v426
      %v428 = vmul.f32 %v420, %v426
      %v429 = vmul.f32 %v424, %v426
      %v430 = vld [vmem:[%s277 + $0x1] sm:$0x1]
      %431 = vset.pattern.permute.xlu0 4
      %432 = vperm.xlu0 %431, %v301
      %v433 = vpop.permute.xlu0 %432
      %435 = vset.pattern.permute.xlu0 4
      %436 = vperm.xlu0 %435, %v302
      %v437 = vpop.permute.xlu0 %436
      %439 = vset.pattern.permute.xlu0 4
      %440 = vperm.xlu0 %439, %v303
      %v441 = vpop.permute.xlu0 %440
      %v443 = vperm.slane %v430, 0
      %v444 = vmul.f32 %v433, %v443
      %v445 = vmul.f32 %v437, %v443
      %v446 = vmul.f32 %v441, %v443
      %v447 = vadd.f32 %v427, %v444
      %v448 = vadd.f32 %v428, %v445
      %v449 = vadd.f32 %v429, %v446
      %450 = vset.pattern.permute.xlu0 1
      %451 = vperm.xlu0 %450, %v301
      %v452 = vpop.permute.xlu0 %451
      %454 = vset.pattern.permute.xlu0 1
      %455 = vperm.xlu0 %454, %v302
      %v456 = vpop.permute.xlu0 %455
      %458 = vset.pattern.permute.xlu0 1
      %459 = vperm.xlu0 %458, %v303
      %v460 = vpop.permute.xlu0 %459
      %v462 = vmul.f32 %v452, %v382
      %v463 = vmul.f32 %v456, %v397
      %v464 = vmul.f32 %v460, %v412
      %465 = vset.pattern.permute.xlu0 2
      %466 = vperm.xlu0 %465, %v301
      %v467 = vpop.permute.xlu0 %466
      %469 = vset.pattern.permute.xlu0 2
      %470 = vperm.xlu0 %469, %v302
      %v471 = vpop.permute.xlu0 %470
      %473 = vset.pattern.permute.xlu0 2
      %474 = vperm.xlu0 %473, %v303
      %v475 = vpop.permute.xlu0 %474
      %v477 = vadd.f32 %v462, %v467
      %v478 = vadd.f32 %v463, %v471
      %v479 = vadd.f32 %v464, %v475
      %v480 = vmul.f32 %v477, %v382
      %v481 = vmul.f32 %v478, %v397
      %v482 = vmul.f32 %v479, %v412
      %v483 = vadd.f32 %v480, %v447
      %v484 = vadd.f32 %v481, %v448
      %v485 = vadd.f32 %v482, %v449
      %486 = vst.msk [vmem:[%s293] sm:$0xff] %vm352, %v483
      %487 = vst.msk [vmem:[%s293 + $0x8] sm:$0xff] %vm352, %v484
      %488 = vst.msk [vmem:[%s293 + $0x10] sm:$0xff] %vm352, %v485
      %p489 = scmp.lt.s32.totalorder %s22, 1
      %s490 = scalar_select %p489, %s22, 1
      %p491 = scmp.lt.s32.totalorder %s21, 0
      %s492 = scalar_select %p491, %s21, 0
      %s493 = smul.addr %s490, 3
      %s494 = sadd.s32 %s492, %s493
      %s495 = smul.addr %s494, 8
      %s496 = scalar_lea.vmem %s4, %s495
      %p497 = scmp.lt.s32.totalorder %s22, 1
      %s498 = scalar_select %p497, %s22, 1
      %p499 = scmp.lt.s32.totalorder %s21, 0
      %s500 = scalar_select %p499, %s21, 0
      %s501 = smul.addr %s498, 3
      %s502 = sadd.s32 %s500, %s501
      %s503 = smul.addr %s502, 8
      %s504 = scalar_lea.vmem %s5, %s503
      // Predicated region
      $region37: #{_lambda_.4} parent=35 // pred_check
        %p505 = pneg %p145
      $region38: #{_lambda_.4} parent=35 // pred_check_branch
        %507 = sbr.rel (%p505) target = $region40
      $region39: #{_lambda_.4} parent=35 // pred_region
        _
      $region40: #{_lambda_.4} parent=35 // pred_fallthru
        _
      // Predicated region
      $region41: #{_lambda_.4} parent=35 // pred_check
        %p508 = pneg %p173
      $region42: #{_lambda_.4} parent=35 // pred_check_branch
        %510 = sbr.rel (%p508) target = $region44
      $region43: #{_lambda_.4} parent=35 // pred_region
        _
      $region44: #{_lambda_.4} parent=35 // pred_fallthru
        _
    $region36: #{_lambda_.4} parent=5 // pred_fallthru
      _
    %p511 = scmp.le.s32.totalorder 2, %s12
    // Predicated region
    $region45: #{_lambda_.4} parent=5 // pred_check
      %p512 = pneg %p511
    $region46: #{_lambda_.4} parent=5 // pred_check_branch
      %514 = sbr.rel (%p512) target = $region48
    $region47: #{_lambda_.4} parent=5 // pred_region
      %s515 = ssub.s32 %s12, 2
      // Predicated region
      $region49: #{_lambda_.4} parent=47 // pred_check
        %p516 = pneg %p151
      $region50: #{_lambda_.4} parent=47 // pred_check_branch
        %518 = sbr.rel (%p516) target = $region52
      $region51: #{_lambda_.4} parent=47 // pred_region
        %p519 = scmp.lt.s32.totalorder %s24, 1
        %s520 = scalar_select %p519, %s24, 1
        %p521 = scmp.lt.s32.totalorder %s23, 0
        %s522 = scalar_select %p521, %s23, 0
        %s523 = smul.addr %s520, 3
        %s524 = sadd.s32 %s522, %s523
        %s525 = smul.addr %s524, 8
        %s526 = scalar_lea.vmem %s4, %s525
      $region52: #{_lambda_.4} parent=47 // pred_fallthru
        _
      // Predicated region
      $region53: #{_lambda_.4} parent=47 // pred_check
        %p527 = pneg %p179
      $region54: #{_lambda_.4} parent=47 // pred_check_branch
        %529 = sbr.rel (%p527) target = $region56
      $region55: #{_lambda_.4} parent=47 // pred_region
        %p530 = scmp.lt.s32.totalorder %s24, 1
        %s531 = scalar_select %p530, %s24, 1
        %p532 = scmp.lt.s32.totalorder %s23, 0
        %s533 = scalar_select %p532, %s23, 0
        %s534 = smul.addr %s531, 3
        %s535 = sadd.s32 %s533, %s534
        %s536 = smul.addr %s535, 8
        %s537 = scalar_lea.vmem %s5, %s536
      $region56: #{_lambda_.4} parent=47 // pred_fallthru
        _
    $region48: #{_lambda_.4} parent=5 // pred_fallthru
      _
  $region6: #{_lambda_.4} parent=0 // loop_footer
    %s16 = sadd.s32 1, %s12
  $region7: #{_lambda_.4} parent=0 // loop_footer_branch
    %11 = sbr.rel target = $region3
  $region8: #{_lambda_.4} parent=0 // loop_exit
    _

</llo_original>
